<compile_context>
chip_gen: v6e
topology: v6e:2x2x1
jax: 0.10.0
libtpu: 0.0.40
codegen_flags: <defaults>
</compile_context>

<pallas_src>
import jax
import jax.numpy as jnp
from jax import lax
from jax.experimental import pallas as pl
from jax.experimental.pallas import tpu as pltpu


def mlp_kernel(x_ref,
               w1, b1, w2, b2, w3, b3, w4, b4, w5, b5,
               w6, b6,
               out_ref):
    """Fused eval-mode MLP forward for one (TB, d_in) batch tile.

    w1..w5: bf16 (d_in, d_out) with BN scale folded into columns.
    b1..b5: f32 (1, d_out) = bias*scale + shift.
    w6:     bf16 (1, 64) output-layer row.   b6: f32 (1, 1).
    out_ref: f32 (1, TB) lane-dense row of predictions for this tile.
    Dropout = identity (eval mode).
    """
    h = x_ref[...]                                               # (TB, d_in) bf16
    for w, b in ((w1, b1), (w2, b2), (w3, b3), (w4, b4), (w5, b5)):
        h = jnp.dot(h, w[...], preferred_element_type=jnp.float32) + b[...]
        h = jnp.maximum(h, 0.0).astype(jnp.bfloat16)
    # Final Linear(64, 1): contract the 64-dim of w6 (1, 64) against the 64-dim
    # of h (TB, 64) -> (1, TB).  Result is lane-dense, so the store is unmasked.
    row = lax.dot_general(w6[...], h, (((1,), (1,)), ((), ())),
                          preferred_element_type=jnp.float32)    # (1, TB)
    out_ref[...] = row + b6[...]


def _round_up(n, m):
    return ((n + m - 1) // m) * m


def enhanced_nn_forward(x, kernel_params, *, tb=1024):
    """x: (B, input_size) f32.  Returns (B,) f32 (eval-mode forward)."""
    B, d_in = x.shape
    assert tb % 128 == 0, "tb must be a multiple of 128 (lane-dense output)"

    # Tile-size selection:
    #  - small batch: clamp to round_up(B, 8) (one tile, no wasted MXU work)
    #  - medium batch (fits one tile but >512 rows): split into 2 lane-dense
    #    tiles so the v7x megacore gets >=2 grid steps
    #  - large batch: use tb (multiple of 128)
    if B <= tb:
        if B > 512:
            tb_eff = _round_up(pl.cdiv(B, 2), 128)
        else:
            tb_eff = _round_up(B, 8)
    else:
        tb_eff = tb
    n_tiles = pl.cdiv(B, tb_eff)
    Bp = n_tiles * tb_eff

    xb = x.astype(jnp.bfloat16)
    if Bp != B:
        xb = jnp.pad(xb, ((0, Bp - B), (0, 0)))

    # Batch-tiled x; lane-dense (1, tb_eff) output row per tile; params are
    # full blocks with a constant index_map so Pallas keeps them VMEM-resident
    # across grid steps.
    x_spec = pl.BlockSpec((tb_eff, d_in), lambda i: (i, 0))
    out_spec = pl.BlockSpec((1, tb_eff), lambda i: (0, i))
    param_specs = [pl.BlockSpec(p.shape, lambda i: (0, 0)) for p in kernel_params]

    out = pl.pallas_call(
        mlp_kernel,
        out_shape=jax.ShapeDtypeStruct((1, Bp), jnp.float32),
        grid=(n_tiles,),
        in_specs=[x_spec] + param_specs,
        out_specs=out_spec,
        compiler_params=pltpu.CompilerParams(
            dimension_semantics=("parallel",),
            vmem_limit_bytes=48 * 1024 * 1024),
    )(xb, *kernel_params)
    return out[0, :B]  # .squeeze() of the PyTorch (B, 1) result


def init_raw_params(key, input_size):
    """Deterministic PyTorch-like init of the module's raw parameters."""
    dims = [input_size, 1024, 512, 256, 128, 64, 1]
    layers = []
    for i in range(6):
        d_in, d_out = dims[i], dims[i + 1]
        key, kw, kb, kg, kbe, km = jax.random.split(key, 6)
        bound = 1.0 / jnp.sqrt(jnp.float32(d_in))
        w = jax.random.uniform(kw, (d_in, d_out), jnp.float32, -bound, bound)
        b = jax.random.uniform(kb, (d_out,), jnp.float32, -bound, bound)
        if i < 5:
            gamma = 1.0 + 0.01 * jax.random.normal(kg, (d_out,), jnp.float32)
            beta = 0.01 * jax.random.normal(kbe, (d_out,), jnp.float32)
            running_mean = 0.05 * jax.random.normal(km, (d_out,), jnp.float32)
            running_var = jnp.ones((d_out,), jnp.float32)
            layers.append((w, b, gamma, beta, running_mean, running_var))
        else:
            layers.append((w, b))
    return layers


def fold_params(layers, eps=1e-5):
    """Fold eval-mode BatchNorm1d into the Linear weights/biases (host side).

    Returns [w1,b1, ..., w5,b5, w6_row, b6]:
      w1..w5 bf16 (d_in, d_out) with BN scale folded into columns,
      b1..b5 f32 (1, d_out) = bias*scale + shift,
      w6_row bf16 (1, 64), b6 f32 (1, 1).
    """
    kp = []
    for i in range(5):
        w, b, gamma, beta, mean, var = layers[i]
        scale = gamma / jnp.sqrt(var + eps)
        shift = beta - mean * scale
        kp.append((w * scale[None, :]).astype(jnp.bfloat16))
        kp.append((b * scale + shift)[None, :].astype(jnp.float32))
    w6, b6 = layers[5]                                   # (64, 1), (1,)
    kp.append(w6.reshape(1, -1).astype(jnp.bfloat16))    # (1, 64) row
    kp.append(b6.reshape(1, 1).astype(jnp.float32))      # (1, 1)
    return kp


def reference_forward(x, kernel_params):
    """Pure-JAX reference with the same bf16-matmul / f32-accumulate numerics."""
    ws = kernel_params[0::2]
    bs = kernel_params[1::2]
    h = x.astype(jnp.bfloat16)
    for i in range(5):
        h = jnp.dot(h, ws[i], preferred_element_type=jnp.float32) + bs[i]
        h = jnp.maximum(h, 0.0).astype(jnp.bfloat16)
    return jnp.dot(h, ws[5][0], preferred_element_type=jnp.float32) + bs[5][0, 0]


if __name__ == "__main__":
    key = jax.random.PRNGKey(0)
    k_params, k_x1, k_x2 = jax.random.split(key, 3)

    input_size = 32    # stands in for X_train_processed.shape[1]
    layers = init_raw_params(k_params, input_size)
    kparams = fold_params(layers)

    # Case 1: tiny inference batch (single clamped 8-row tile).
    x1 = jax.random.normal(k_x1, (8, input_size), jnp.float32)
    y1 = jax.block_until_ready(enhanced_nn_forward(x1, kparams))
    y1_ref = reference_forward(x1, kparams)
    assert y1.shape == (8,)
    assert jnp.allclose(y1, y1_ref, atol=2e-3, rtol=2e-3), (
        "max abs diff = %.3e" % float(jnp.max(jnp.abs(y1 - y1_ref))))

    # Case 2: medium batch exercising the multi-tile (2-step, megacore) path
    # and the padded tail rows.
    x2 = jax.random.normal(k_x2, (600, input_size), jnp.float32)
    y2 = jax.block_until_ready(enhanced_nn_forward(x2, kparams))
    y2_ref = reference_forward(x2, kparams)
    assert y2.shape == (600,)
    assert jnp.allclose(y2, y2_ref, atol=2e-3, rtol=2e-3), (
        "max abs diff = %.3e" % float(jnp.max(jnp.abs(y2 - y2_ref))))

    # TODO(synk): training-mode Dropout / batch-statistics BatchNorm are not
    # implemented (eval-mode forward only, matching module.eval()).
    print("KERNEL_OK")
</pallas_src>

<mosaic_0001>
module attributes {stable_mosaic.version = 11 : i64} {
  func.func @mlp_kernel(%arg0: i32, %arg1: memref<8x32xbf16, #tpu.memory_space<vmem>>, %arg2: memref<32x1024xbf16, #tpu.memory_space<vmem>>, %arg3: memref<1x1024xf32, #tpu.memory_space<vmem>>, %arg4: memref<1024x512xbf16, #tpu.memory_space<vmem>>, %arg5: memref<1x512xf32, #tpu.memory_space<vmem>>, %arg6: memref<512x256xbf16, #tpu.memory_space<vmem>>, %arg7: memref<1x256xf32, #tpu.memory_space<vmem>>, %arg8: memref<256x128xbf16, #tpu.memory_space<vmem>>, %arg9: memref<1x128xf32, #tpu.memory_space<vmem>>, %arg10: memref<128x64xbf16, #tpu.memory_space<vmem>>, %arg11: memref<1x64xf32, #tpu.memory_space<vmem>>, %arg12: memref<1x64xbf16, #tpu.memory_space<vmem>>, %arg13: memref<1x1xf32, #tpu.memory_space<vmem>>, %arg14: memref<1x8xf32, #tpu.memory_space<vmem>>) attributes {dimension_semantics = [#tpu.dimension_semantics<parallel>], iteration_bounds = array<i64: 1>, scalar_prefetch = 0 : i64, scratch_operands = 0 : i64, tpu.core_type = #tpu.core_type<tc>, window_params = [{transform_indices = @transform_0, window_bounds = array<i64: 8, 32>}, {pipeline_mode = #tpu.pipeline_mode<synchronous>, transform_indices = @transform_1, window_bounds = array<i64: 32, 1024>}, {pipeline_mode = #tpu.pipeline_mode<synchronous>, transform_indices = @transform_2, window_bounds = array<i64: 1, 1024>}, {pipeline_mode = #tpu.pipeline_mode<synchronous>, transform_indices = @transform_3, window_bounds = array<i64: 1024, 512>}, {pipeline_mode = #tpu.pipeline_mode<synchronous>, transform_indices = @transform_4, window_bounds = array<i64: 1, 512>}, {pipeline_mode = #tpu.pipeline_mode<synchronous>, transform_indices = @transform_5, window_bounds = array<i64: 512, 256>}, {pipeline_mode = #tpu.pipeline_mode<synchronous>, transform_indices = @transform_6, window_bounds = array<i64: 1, 256>}, {pipeline_mode = #tpu.pipeline_mode<synchronous>, transform_indices = @transform_7, window_bounds = array<i64: 256, 128>}, {pipeline_mode = #tpu.pipeline_mode<synchronous>, transform_indices = @transform_8, window_bounds = array<i64: 1, 128>}, {pipeline_mode = #tpu.pipeline_mode<synchronous>, transform_indices = @transform_9, window_bounds = array<i64: 128, 64>}, {pipeline_mode = #tpu.pipeline_mode<synchronous>, transform_indices = @transform_10, window_bounds = array<i64: 1, 64>}, {pipeline_mode = #tpu.pipeline_mode<synchronous>, transform_indices = @transform_11, window_bounds = array<i64: 1, 64>}, {pipeline_mode = #tpu.pipeline_mode<synchronous>, transform_indices = @transform_12, window_bounds = array<i64: 1, 1>}, {transform_indices = @transform_13, window_bounds = array<i64: 1, 8>}]} {
    %c0 = arith.constant 0 : index
    %c0_0 = arith.constant 0 : index
    %0 = vector.load %arg1[%c0, %c0_0] : memref<8x32xbf16, #tpu.memory_space<vmem>>, vector<8x32xbf16>
    %c0_1 = arith.constant 0 : index
    %c0_2 = arith.constant 0 : index
    %1 = vector.load %arg2[%c0_1, %c0_2] : memref<32x1024xbf16, #tpu.memory_space<vmem>>, vector<32x1024xbf16>
    %cst = arith.constant dense<0.000000e+00> : vector<8x1024xf32>
    %2 = tpu.matmul %0, %1, %cst {dimension_numbers = #tpu.dot_dimension_numbers<[1], [0], [0], [1], [0, 0, 1, 1], [], []>} : vector<8x32xbf16>, vector<32x1024xbf16>, vector<8x1024xf32> -> vector<8x1024xf32>
    %c0_3 = arith.constant 0 : index
    %c0_4 = arith.constant 0 : index
    %3 = vector.load %arg3[%c0_3, %c0_4] : memref<1x1024xf32, #tpu.memory_space<vmem>>, vector<1x1024xf32>
    %4 = vector.broadcast %3 : vector<1x1024xf32> to vector<8x1024xf32>
    %5 = arith.addf %2, %4 : vector<8x1024xf32>
    %cst_5 = arith.constant 0.000000e+00 : f32
    %6 = vector.broadcast %cst_5 : f32 to vector<8x1024xf32>
    %7 = arith.maximumf %5, %6 : vector<8x1024xf32>
    %8 = arith.truncf %7 : vector<8x1024xf32> to vector<8x1024xbf16>
    %c0_6 = arith.constant 0 : index
    %c0_7 = arith.constant 0 : index
    %9 = vector.load %arg4[%c0_6, %c0_7] : memref<1024x512xbf16, #tpu.memory_space<vmem>>, vector<1024x512xbf16>
    %cst_8 = arith.constant dense<0.000000e+00> : vector<8x512xf32>
    %10 = tpu.matmul %8, %9, %cst_8 {dimension_numbers = #tpu.dot_dimension_numbers<[1], [0], [0], [1], [0, 0, 1, 1], [], []>} : vector<8x1024xbf16>, vector<1024x512xbf16>, vector<8x512xf32> -> vector<8x512xf32>
    %c0_9 = arith.constant 0 : index
    %c0_10 = arith.constant 0 : index
    %11 = vector.load %arg5[%c0_9, %c0_10] : memref<1x512xf32, #tpu.memory_space<vmem>>, vector<1x512xf32>
    %12 = vector.broadcast %11 : vector<1x512xf32> to vector<8x512xf32>
    %13 = arith.addf %10, %12 : vector<8x512xf32>
    %cst_11 = arith.constant 0.000000e+00 : f32
    %14 = vector.broadcast %cst_11 : f32 to vector<8x512xf32>
    %15 = arith.maximumf %13, %14 : vector<8x512xf32>
    %16 = arith.truncf %15 : vector<8x512xf32> to vector<8x512xbf16>
    %c0_12 = arith.constant 0 : index
    %c0_13 = arith.constant 0 : index
    %17 = vector.load %arg6[%c0_12, %c0_13] : memref<512x256xbf16, #tpu.memory_space<vmem>>, vector<512x256xbf16>
    %cst_14 = arith.constant dense<0.000000e+00> : vector<8x256xf32>
    %18 = tpu.matmul %16, %17, %cst_14 {dimension_numbers = #tpu.dot_dimension_numbers<[1], [0], [0], [1], [0, 0, 1, 1], [], []>} : vector<8x512xbf16>, vector<512x256xbf16>, vector<8x256xf32> -> vector<8x256xf32>
    %c0_15 = arith.constant 0 : index
    %c0_16 = arith.constant 0 : index
    %19 = vector.load %arg7[%c0_15, %c0_16] : memref<1x256xf32, #tpu.memory_space<vmem>>, vector<1x256xf32>
    %20 = vector.broadcast %19 : vector<1x256xf32> to vector<8x256xf32>
    %21 = arith.addf %18, %20 : vector<8x256xf32>
    %cst_17 = arith.constant 0.000000e+00 : f32
    %22 = vector.broadcast %cst_17 : f32 to vector<8x256xf32>
    %23 = arith.maximumf %21, %22 : vector<8x256xf32>
    %24 = arith.truncf %23 : vector<8x256xf32> to vector<8x256xbf16>
    %c0_18 = arith.constant 0 : index
    %c0_19 = arith.constant 0 : index
    %25 = vector.load %arg8[%c0_18, %c0_19] : memref<256x128xbf16, #tpu.memory_space<vmem>>, vector<256x128xbf16>
    %cst_20 = arith.constant dense<0.000000e+00> : vector<8x128xf32>
    %26 = tpu.matmul %24, %25, %cst_20 {dimension_numbers = #tpu.dot_dimension_numbers<[1], [0], [0], [1], [0, 0, 1, 1], [], []>} : vector<8x256xbf16>, vector<256x128xbf16>, vector<8x128xf32> -> vector<8x128xf32>
    %c0_21 = arith.constant 0 : index
    %c0_22 = arith.constant 0 : index
    %27 = vector.load %arg9[%c0_21, %c0_22] : memref<1x128xf32, #tpu.memory_space<vmem>>, vector<1x128xf32>
    %28 = vector.broadcast %27 : vector<1x128xf32> to vector<8x128xf32>
    %29 = arith.addf %26, %28 : vector<8x128xf32>
    %cst_23 = arith.constant 0.000000e+00 : f32
    %30 = vector.broadcast %cst_23 : f32 to vector<8x128xf32>
    %31 = arith.maximumf %29, %30 : vector<8x128xf32>
    %32 = arith.truncf %31 : vector<8x128xf32> to vector<8x128xbf16>
    %c0_24 = arith.constant 0 : index
    %c0_25 = arith.constant 0 : index
    %33 = vector.load %arg10[%c0_24, %c0_25] : memref<128x64xbf16, #tpu.memory_space<vmem>>, vector<128x64xbf16>
    %cst_26 = arith.constant dense<0.000000e+00> : vector<8x64xf32>
    %34 = tpu.matmul %32, %33, %cst_26 {dimension_numbers = #tpu.dot_dimension_numbers<[1], [0], [0], [1], [0, 0, 1, 1], [], []>} : vector<8x128xbf16>, vector<128x64xbf16>, vector<8x64xf32> -> vector<8x64xf32>
    %c0_27 = arith.constant 0 : index
    %c0_28 = arith.constant 0 : index
    %35 = vector.load %arg11[%c0_27, %c0_28] : memref<1x64xf32, #tpu.memory_space<vmem>>, vector<1x64xf32>
    %36 = vector.broadcast %35 : vector<1x64xf32> to vector<8x64xf32>
    %37 = arith.addf %34, %36 : vector<8x64xf32>
    %cst_29 = arith.constant 0.000000e+00 : f32
    %38 = vector.broadcast %cst_29 : f32 to vector<8x64xf32>
    %39 = arith.maximumf %37, %38 : vector<8x64xf32>
    %40 = arith.truncf %39 : vector<8x64xf32> to vector<8x64xbf16>
    %c0_30 = arith.constant 0 : index
    %c0_31 = arith.constant 0 : index
    %41 = vector.load %arg12[%c0_30, %c0_31] : memref<1x64xbf16, #tpu.memory_space<vmem>>, vector<1x64xbf16>
    %cst_32 = arith.constant dense<0.000000e+00> : vector<1x8xf32>
    %42 = tpu.matmul %41, %40, %cst_32 {dimension_numbers = #tpu.dot_dimension_numbers<[1], [1], [0], [0], [0, 0, 1, 0], [], []>} : vector<1x64xbf16>, vector<8x64xbf16>, vector<1x8xf32> -> vector<1x8xf32>
    %c0_33 = arith.constant 0 : index
    %c0_34 = arith.constant 0 : index
    %43 = vector.load %arg13[%c0_33, %c0_34] : memref<1x1xf32, #tpu.memory_space<vmem>>, vector<1x1xf32>
    %44 = vector.broadcast %43 : vector<1x1xf32> to vector<1x8xf32>
    %45 = arith.addf %42, %44 : vector<1x8xf32>
    %c0_35 = arith.constant 0 : index
    %c0_36 = arith.constant 0 : index
    %46 = vector.load %arg14[%c0_35, %c0_36] : memref<1x8xf32, #tpu.memory_space<vmem>>, vector<1x8xf32>
    tpu.vector_store %arg14[%c0_35, %c0_36], %45 {strides = array<i32>} : memref<1x8xf32, #tpu.memory_space<vmem>>, vector<1x8xf32>,
    return
  }
  func.func @transform_0(%arg0: i32) -> (i32, i32) {
    %c0_i32 = arith.constant 0 : i32
    %c0_i32_0 = arith.constant 0 : i32
    return %arg0, %c0_i32 : i32, i32
  }
  func.func @transform_1(%arg0: i32) -> (i32, i32) {
    %c0_i32 = arith.constant 0 : i32
    %c0_i32_0 = arith.constant 0 : i32
    %c0_i32_1 = arith.constant 0 : i32
    return %c0_i32, %c0_i32_0 : i32, i32
  }
  func.func @transform_2(%arg0: i32) -> (i32, i32) {
    %c0_i32 = arith.constant 0 : i32
    %c0_i32_0 = arith.constant 0 : i32
    %c0_i32_1 = arith.constant 0 : i32
    return %c0_i32, %c0_i32_0 : i32, i32
  }
  func.func @transform_3(%arg0: i32) -> (i32, i32) {
    %c0_i32 = arith.constant 0 : i32
    %c0_i32_0 = arith.constant 0 : i32
    %c0_i32_1 = arith.constant 0 : i32
    return %c0_i32, %c0_i32_0 : i32, i32
  }
  func.func @transform_4(%arg0: i32) -> (i32, i32) {
    %c0_i32 = arith.constant 0 : i32
    %c0_i32_0 = arith.constant 0 : i32
    %c0_i32_1 = arith.constant 0 : i32
    return %c0_i32, %c0_i32_0 : i32, i32
  }
  func.func @transform_5(%arg0: i32) -> (i32, i32) {
    %c0_i32 = arith.constant 0 : i32
    %c0_i32_0 = arith.constant 0 : i32
    %c0_i32_1 = arith.constant 0 : i32
    return %c0_i32, %c0_i32_0 : i32, i32
  }
  func.func @transform_6(%arg0: i32) -> (i32, i32) {
    %c0_i32 = arith.constant 0 : i32
    %c0_i32_0 = arith.constant 0 : i32
    %c0_i32_1 = arith.constant 0 : i32
    return %c0_i32, %c0_i32_0 : i32, i32
  }
  func.func @transform_7(%arg0: i32) -> (i32, i32) {
    %c0_i32 = arith.constant 0 : i32
    %c0_i32_0 = arith.constant 0 : i32
    %c0_i32_1 = arith.constant 0 : i32
    return %c0_i32, %c0_i32_0 : i32, i32
  }
  func.func @transform_8(%arg0: i32) -> (i32, i32) {
    %c0_i32 = arith.constant 0 : i32
    %c0_i32_0 = arith.constant 0 : i32
    %c0_i32_1 = arith.constant 0 : i32
    return %c0_i32, %c0_i32_0 : i32, i32
  }
  func.func @transform_9(%arg0: i32) -> (i32, i32) {
    %c0_i32 = arith.constant 0 : i32
    %c0_i32_0 = arith.constant 0 : i32
    %c0_i32_1 = arith.constant 0 : i32
    return %c0_i32, %c0_i32_0 : i32, i32
  }
  func.func @transform_10(%arg0: i32) -> (i32, i32) {
    %c0_i32 = arith.constant 0 : i32
    %c0_i32_0 = arith.constant 0 : i32
    %c0_i32_1 = arith.constant 0 : i32
    return %c0_i32, %c0_i32_0 : i32, i32
  }
  func.func @transform_11(%arg0: i32) -> (i32, i32) {
    %c0_i32 = arith.constant 0 : i32
    %c0_i32_0 = arith.constant 0 : i32
    %c0_i32_1 = arith.constant 0 : i32
    return %c0_i32, %c0_i32_0 : i32, i32
  }
  func.func @transform_12(%arg0: i32) -> (i32, i32) {
    %c0_i32 = arith.constant 0 : i32
    %c0_i32_0 = arith.constant 0 : i32
    %c0_i32_1 = arith.constant 0 : i32
    return %c0_i32, %c0_i32_0 : i32, i32
  }
  func.func @transform_13(%arg0: i32) -> (i32, i32) {
    %c0_i32 = arith.constant 0 : i32
    %c0_i32_0 = arith.constant 0 : i32
    return %c0_i32, %arg0 : i32, i32
  }
}

</mosaic_0001>

<llo_original>
// kernel: tpu_custom_call.1
$region0: #{tpu_custom_call.1}
  #allocation0 [shape = 'u32[]', space=smem, size = 0x4, offset = 0x4, fixed_abs, tag = 'smem constant byte address 0x4 - core index']
  #allocation1 [shape = 'u32[144,128]{1,0:T(1,128)}', space=vmem, size = 0x12000, scoped, tag = 'internal scratch']
  #allocation2 [shape = 'f32[1,1]{1,0:T(1,128)S(1)}', space=vmem, size = 0x200, scoped, tag = 'scoped memory for tpu_custom_call.1']
  %s0 = inlined_call_operand.vmem [shape: bf16[8,32], index: 0, kind: input, shape index: {}]
  %s1 = inlined_call_operand.hbm [shape: bf16[32,1024], index: 1, kind: input, shape index: {}]
  %s2 = inlined_call_operand.vmem [shape: f32[1,1024], index: 2, kind: input, shape index: {}]
  %s3 = inlined_call_operand.hbm [shape: bf16[1024,512], index: 3, kind: input, shape index: {}]
  %s4 = inlined_call_operand.vmem [shape: f32[1,512], index: 4, kind: input, shape index: {}]
  %s5 = inlined_call_operand.hbm [shape: bf16[512,256], index: 5, kind: input, shape index: {}]
  %s6 = inlined_call_operand.vmem [shape: f32[1,256], index: 6, kind: input, shape index: {}]
  %s7 = inlined_call_operand.hbm [shape: bf16[256,128], index: 7, kind: input, shape index: {}]
  %s8 = inlined_call_operand.vmem [shape: f32[1,128], index: 8, kind: input, shape index: {}]
  %s9 = inlined_call_operand.vmem [shape: bf16[128,64], index: 9, kind: input, shape index: {}]
  %s10 = inlined_call_operand.vmem [shape: f32[1,64], index: 10, kind: input, shape index: {}]
  %s11 = inlined_call_operand.vmem [shape: bf16[1,64], index: 11, kind: input, shape index: {}]
  %s12 = inlined_call_operand.<no memory space> [shape: f32[1,1], index: 12, kind: input, shape index: {}]
  %s13 = inlined_call_operand.hbm [shape: f32[1,8], index: 13, kind: output, shape index: {}]
  %s14 = sld [smem:[#allocation0]]
  $region78: #{tpu_custom_call.1} parent=0
    _
  %s16 = ssub.s32 1, %s14
  %s17 = scalar_select 0, %s16, %s14
  %v18 = vstv %s12
  %19 = vst [vmem:[#allocation2] sm:$0x1] %v18
  $region1: #{tpu_custom_call.1} parent=0
    #allocation3 [shape = 'u8[65536]{0}', space=vmem, size = 0x10000, scoped, tag = 'input window, operand 1, single buffered']
    #allocation4 [shape = 's32[1]{0}', space=sflag, size = 0x4, scoped, tag = 'scoped memory for tpu_custom_call.1']
    #allocation5 [shape = 's32[1]{0}', space=sflag, size = 0x4, scoped, tag = 'scoped memory for tpu_custom_call.1']
    #allocation6 [shape = 'u8[1048576]{0}', space=vmem, size = 0x100000, scoped, tag = 'input window, operand 3, single buffered']
    #allocation7 [shape = 's32[1]{0}', space=sflag, size = 0x4, scoped, tag = 'scoped memory for tpu_custom_call.1']
    #allocation8 [shape = 'u8[262144]{0}', space=vmem, size = 0x40000, scoped, tag = 'input window, operand 5, single buffered']
    #allocation9 [shape = 'u8[65536]{0}', space=vmem, size = 0x10000, scoped, tag = 'input window, operand 7, single buffered']
    #allocation10 [shape = 's32[1]{0}', space=sflag, size = 0x4, scoped, tag = 'scoped memory for tpu_custom_call.1']
    #allocation11 [shape = 'u8[512]{0}', space=vmem, size = 0x400, scoped, tag = 'output window, operand 0, single buffered']
    %20 = vsyncpa [#allocation4], 0
    %21 = vsyncpa [#allocation7], 0
    %22 = vsyncpa [#allocation10], 0
    %23 = vsyncpa [#allocation5], 0
    // Predicated region
    $region2: #{tpu_custom_call.1} parent=1 // pred_check
      _
    $region3: #{tpu_custom_call.1} parent=1 // pred_check_branch
      %25 = sbr.rel (0) target = $region5
    $region4: #{tpu_custom_call.1} parent=1 // pred_region
      _
    $region5: #{tpu_custom_call.1} parent=1 // pred_fallthru
      _
    // Predicated region
    $region6: #{tpu_custom_call.1} parent=1 // pred_check
      _
    $region7: #{tpu_custom_call.1} parent=1 // pred_check_branch
      %27 = sbr.rel (0) target = $region9
    $region8: #{tpu_custom_call.1} parent=1 // pred_region
      %s29 = ssub.s32 2048, 2048
      %30 = vsyncadd [#allocation4], %s29
      %s31 = sshll.u32 [#allocation3], 4
      %s32 = int_to_ptr.vmem [resolvable:$true] %s31
      %37 = dma.hbm_to_vmem [thread:$0]  %s1, 2048, %s32, [#allocation4], 512, 512, 32
    $region9: #{tpu_custom_call.1} parent=1 // pred_fallthru
      _
    // Predicated region
    $region10: #{tpu_custom_call.1} parent=1 // pred_check
      _
    $region11: #{tpu_custom_call.1} parent=1 // pred_check_branch
      %39 = sbr.rel (0) target = $region13
    $region12: #{tpu_custom_call.1} parent=1 // pred_region
      _
    $region13: #{tpu_custom_call.1} parent=1 // pred_fallthru
      _
    // Predicated region
    $region14: #{tpu_custom_call.1} parent=1 // pred_check
      _
    $region15: #{tpu_custom_call.1} parent=1 // pred_check_branch
      %41 = sbr.rel (0) target = $region17
    $region16: #{tpu_custom_call.1} parent=1 // pred_region
      %s43 = ssub.s32 32768, 32768
      %44 = vsyncadd [#allocation7], %s43
      %s45 = sshll.u32 [#allocation6], 4
      %s46 = int_to_ptr.vmem [resolvable:$true] %s45
      %51 = dma.hbm_to_vmem [thread:$0]  %s3, 32768, %s46, [#allocation7], 256, 256, 16
    $region17: #{tpu_custom_call.1} parent=1 // pred_fallthru
      _
    // Predicated region
    $region18: #{tpu_custom_call.1} parent=1 // pred_check
      _
    $region19: #{tpu_custom_call.1} parent=1 // pred_check_branch
      %53 = sbr.rel (0) target = $region21
    $region20: #{tpu_custom_call.1} parent=1 // pred_region
      _
    $region21: #{tpu_custom_call.1} parent=1 // pred_fallthru
      _
    // Predicated region
    $region22: #{tpu_custom_call.1} parent=1 // pred_check
      _
    $region23: #{tpu_custom_call.1} parent=1 // pred_check_branch
      %55 = sbr.rel (0) target = $region25
    $region24: #{tpu_custom_call.1} parent=1 // pred_region
      %s57 = ssub.s32 8192, 8192
      %58 = vsyncadd [#allocation7], %s57
      %s59 = sshll.u32 [#allocation8], 4
      %s60 = int_to_ptr.vmem [resolvable:$true] %s59
      %65 = dma.hbm_to_vmem [thread:$0]  %s5, 8192, %s60, [#allocation7], 128, 128, 8
    $region25: #{tpu_custom_call.1} parent=1 // pred_fallthru
      _
    // Predicated region
    $region26: #{tpu_custom_call.1} parent=1 // pred_check
      _
    $region27: #{tpu_custom_call.1} parent=1 // pred_check_branch
      %67 = sbr.rel (0) target = $region29
    $region28: #{tpu_custom_call.1} parent=1 // pred_region
      _
    $region29: #{tpu_custom_call.1} parent=1 // pred_fallthru
      _
    // Predicated region
    $region30: #{tpu_custom_call.1} parent=1 // pred_check
      _
    $region31: #{tpu_custom_call.1} parent=1 // pred_check_branch
      %69 = sbr.rel (0) target = $region33
    $region32: #{tpu_custom_call.1} parent=1 // pred_region
      %s71 = ssub.s32 2048, 2048
      %72 = vsyncadd [#allocation10], %s71
      %s73 = sshll.u32 [#allocation9], 4
      %s74 = int_to_ptr.vmem [resolvable:$true] %s73
      %79 = dma.hbm_to_vmem [thread:$0]  %s7, 2048, %s74, [#allocation10], 64, 64, 4
    $region33: #{tpu_custom_call.1} parent=1 // pred_fallthru
      _
    // Predicated region
    $region34: #{tpu_custom_call.1} parent=1 // pred_check
      _
    $region35: #{tpu_custom_call.1} parent=1 // pred_check_branch
      %81 = sbr.rel (0) target = $region37
    $region36: #{tpu_custom_call.1} parent=1 // pred_region
      _
    $region37: #{tpu_custom_call.1} parent=1 // pred_fallthru
      _
    // Predicated region
    $region38: #{tpu_custom_call.1} parent=1 // pred_check
      _
    $region39: #{tpu_custom_call.1} parent=1 // pred_check_branch
      %83 = sbr.rel (0) target = $region41
    $region40: #{tpu_custom_call.1} parent=1 // pred_region
      _
    $region41: #{tpu_custom_call.1} parent=1 // pred_fallthru
      _
    // Predicated region
    $region42: #{tpu_custom_call.1} parent=1 // pred_check
      _
    $region43: #{tpu_custom_call.1} parent=1 // pred_check_branch
      %85 = sbr.rel (0) target = $region45
    $region44: #{tpu_custom_call.1} parent=1 // pred_region
      _
    $region45: #{tpu_custom_call.1} parent=1 // pred_fallthru
      _
    // Predicated region
    $region46: #{tpu_custom_call.1} parent=1 // pred_check
      _
    $region47: #{tpu_custom_call.1} parent=1 // pred_check_branch
      %87 = sbr.rel (0) target = $region49
    $region48: #{tpu_custom_call.1} parent=1 // pred_region
      _
    $region49: #{tpu_custom_call.1} parent=1 // pred_fallthru
      _
    // Predicated region
    $region50: #{tpu_custom_call.1} parent=1 // pred_check
      _
    $region51: #{tpu_custom_call.1} parent=1 // pred_check_branch
      %89 = sbr.rel (0) target = $region53
    $region52: #{tpu_custom_call.1} parent=1 // pred_region
      _
    $region53: #{tpu_custom_call.1} parent=1 // pred_fallthru
      _
    // Predicated region
    $region54: #{tpu_custom_call.1} parent=1 // pred_check
      _
    $region55: #{tpu_custom_call.1} parent=1 // pred_check_branch
      %91 = sbr.rel (0) target = $region57
    $region56: #{tpu_custom_call.1} parent=1 // pred_region
      %92 = dma.done [#allocation4], 2048
    $region57: #{tpu_custom_call.1} parent=1 // pred_fallthru
      _
    // Predicated region
    $region58: #{tpu_custom_call.1} parent=1 // pred_check
      _
    $region59: #{tpu_custom_call.1} parent=1 // pred_check_branch
      %94 = sbr.rel (0) target = $region61
    $region60: #{tpu_custom_call.1} parent=1 // pred_region
      %95 = dma.done [#allocation7], 32768
    $region61: #{tpu_custom_call.1} parent=1 // pred_fallthru
      _
    // Predicated region
    $region62: #{tpu_custom_call.1} parent=1 // pred_check
      _
    $region63: #{tpu_custom_call.1} parent=1 // pred_check_branch
      %97 = sbr.rel (0) target = $region65
    $region64: #{tpu_custom_call.1} parent=1 // pred_region
      %98 = dma.done [#allocation7], 8192
    $region65: #{tpu_custom_call.1} parent=1 // pred_fallthru
      _
    // Predicated region
    $region66: #{tpu_custom_call.1} parent=1 // pred_check
      _
    $region67: #{tpu_custom_call.1} parent=1 // pred_check_branch
      %100 = sbr.rel (0) target = $region69
    $region68: #{tpu_custom_call.1} parent=1 // pred_region
      %101 = dma.done [#allocation10], 2048
    $region69: #{tpu_custom_call.1} parent=1 // pred_fallthru
      _
    %v103 = vld [vmem:[%s0] sm:$0xf]
    %v104 = vld [vmem:[#allocation3] sm:$0xff]
    %v105 = vld [vmem:[#allocation3 + $0x8] sm:$0xff]
    %v106 = vld [vmem:[#allocation3 + $0x10] sm:$0xff]
    %v107 = vld [vmem:[#allocation3 + $0x18] sm:$0xff]
    %v108 = vld [vmem:[#allocation3 + $0x20] sm:$0xff]
    %v109 = vld [vmem:[#allocation3 + $0x28] sm:$0xff]
    %v110 = vld [vmem:[#allocation3 + $0x30] sm:$0xff]
    %v111 = vld [vmem:[#allocation3 + $0x38] sm:$0xff]
    %v112 = vld [vmem:[#allocation3 + $0x40] sm:$0xff]
    %v113 = vld [vmem:[#allocation3 + $0x48] sm:$0xff]
    %v114 = vld [vmem:[#allocation3 + $0x50] sm:$0xff]
    %v115 = vld [vmem:[#allocation3 + $0x58] sm:$0xff]
    %v116 = vld [vmem:[#allocation3 + $0x60] sm:$0xff]
    %v117 = vld [vmem:[#allocation3 + $0x68] sm:$0xff]
    %v118 = vld [vmem:[#allocation3 + $0x70] sm:$0xff]
    %v119 = vld [vmem:[#allocation3 + $0x78] sm:$0xff]
    %v120 = vld [vmem:[%s2] sm:$0xff]
    %v122 = vlaneseq
    %v123 = vshrl.u32 %v122, 7
    %v124 = vsub.s32 0, %v123
    %v125 = vrot.slane %v120, %v124
    %v126 = vlaneseq
    %v127 = vshrl.u32 %v126, 7
    %v128 = vsub.s32 1, %v127
    %v129 = vrot.slane %v120, %v128
    %v130 = vlaneseq
    %v131 = vshrl.u32 %v130, 7
    %v132 = vsub.s32 2, %v131
    %v133 = vrot.slane %v120, %v132
    %v134 = vlaneseq
    %v135 = vshrl.u32 %v134, 7
    %v136 = vsub.s32 3, %v135
    %v137 = vrot.slane %v120, %v136
    %v138 = vlaneseq
    %v139 = vshrl.u32 %v138, 7
    %v140 = vsub.s32 4, %v139
    %v141 = vrot.slane %v120, %v140
    %v142 = vlaneseq
    %v143 = vshrl.u32 %v142, 7
    %v144 = vsub.s32 5, %v143
    %v145 = vrot.slane %v120, %v144
    %v146 = vlaneseq
    %v147 = vshrl.u32 %v146, 7
    %v148 = vsub.s32 6, %v147
    %v149 = vrot.slane %v120, %v148
    %v150 = vlaneseq
    %v151 = vshrl.u32 %v150, 7
    %v152 = vsub.s32 7, %v151
    %v153 = vrot.slane %v120, %v152
    %v178 = vunpack.c.l.b16 %v104
    %v179 = vunpack.c.h.b16 %v104
    %v180 = vunpack.c.l.b16 %v105
    %v181 = vunpack.c.h.b16 %v105
    %v182 = vunpack.c.l.b16 %v106
    %v183 = vunpack.c.h.b16 %v106
    %v184 = vunpack.c.l.b16 %v107
    %v185 = vunpack.c.h.b16 %v107
    %v186 = vunpack.c.l.b16 %v108
    %v187 = vunpack.c.h.b16 %v108
    %v188 = vunpack.c.l.b16 %v109
    %v189 = vunpack.c.h.b16 %v109
    %v190 = vunpack.c.l.b16 %v110
    %v191 = vunpack.c.h.b16 %v110
    %v192 = vunpack.c.l.b16 %v111
    %v193 = vunpack.c.h.b16 %v111
    %v194 = vunpack.c.l.b16 %v112
    %v195 = vunpack.c.h.b16 %v112
    %v196 = vunpack.c.l.b16 %v113
    %v197 = vunpack.c.h.b16 %v113
    %v198 = vunpack.c.l.b16 %v114
    %v199 = vunpack.c.h.b16 %v114
    %v200 = vunpack.c.l.b16 %v115
    %v201 = vunpack.c.h.b16 %v115
    %v202 = vunpack.c.l.b16 %v116
    %v203 = vunpack.c.h.b16 %v116
    %v204 = vunpack.c.l.b16 %v117
    %v205 = vunpack.c.h.b16 %v117
    %v206 = vunpack.c.l.b16 %v118
    %v207 = vunpack.c.h.b16 %v118
    %v208 = vunpack.c.l.b16 %v119
    %v209 = vunpack.c.h.b16 %v119
    %v210 = vpack.c.b16 %v186, %v178
    %v211 = vpack.c.b16 %v187, %v179
    %v212 = vpack.c.b16 %v188, %v180
    %v213 = vpack.c.b16 %v189, %v181
    %v214 = vpack.c.b16 %v190, %v182
    %v215 = vpack.c.b16 %v191, %v183
    %v216 = vpack.c.b16 %v192, %v184
    %v217 = vpack.c.b16 %v193, %v185
    %v218 = vpack.c.b16 %v202, %v194
    %v219 = vpack.c.b16 %v203, %v195
    %v220 = vpack.c.b16 %v204, %v196
    %v221 = vpack.c.b16 %v205, %v197
    %v222 = vpack.c.b16 %v206, %v198
    %v223 = vpack.c.b16 %v207, %v199
    %v224 = vpack.c.b16 %v208, %v200
    %v225 = vpack.c.b16 %v209, %v201
    %vm242 = vcmask 261120
    %v244 = vsel %vm242, %v103, 0
    %246 = vmatprep.subr.bf16.mxu0 0
    %247 = vmatpush1.bf16.msra.mxu0 0
    %248 = vmatprep.subr.bf16.mxu0 0
    %249 = vmatpush1.bf16.msra.mxu0 0
    %250 = vmatprep.subr.bf16.mxu0 0
    %251 = vmatpush1.bf16.msra.mxu0 0
    %252 = vmatprep.subr.bf16.mxu0 0
    %253 = vmatpush1.bf16.msra.mxu0 0
    %254 = vmatprep.subr.bf16.mxu0 0
    %255 = vmatpush1.bf16.msra.mxu0 0
    %256 = vmatprep.subr.bf16.mxu0 0
    %257 = vmatpush1.bf16.msra.mxu0 0
    %258 = vmatprep.subr.bf16.mxu0 %v219
    %259 = vmatpush1.bf16.msra.mxu0 %v218
    %260 = vmatprep.subr.bf16.mxu0 %v211
    %261 = vmatpush1.bf16.msra.mxu0 %v210
    %262 = vmatprep.subr.bf16.mxu0 0
    %263 = vmatpush2.bf16.msra.mxu0 0
    %264 = vmatprep.subr.bf16.mxu0 0
    %265 = vmatpush2.bf16.msra.mxu0 0
    %266 = vmatprep.subr.bf16.mxu0 0
    %267 = vmatpush2.bf16.msra.mxu0 0
    %268 = vmatprep.subr.bf16.mxu0 0
    %269 = vmatpush2.bf16.msra.mxu0 0
    %270 = vmatprep.subr.bf16.mxu0 0
    %271 = vmatpush2.bf16.msra.mxu0 0
    %272 = vmatprep.subr.bf16.mxu0 0
    %273 = vmatpush2.bf16.msra.mxu0 0
    %274 = vmatprep.subr.bf16.mxu0 0
    %275 = vmatpush2.bf16.msra.mxu0 0
    %276 = vmatprep.subr.bf16.mxu0 0
    %277 = vmatpush2.bf16.msra.mxu0 0
    %278 = vmatprep.mubr.bf16.mxu0 0
    %279 = vmatmul.mubr.bf16.gmra.mxu0 %v244
    %v280 = vpop.f32.mrf.mxu0
    %v281 = vadd.f32 %v125, %v280
    %v282 = vpop.f32.mrf.mxu0
    %v283 = vadd.f32 %v129, %v282
    %v284 = vpop.f32.mrf.mxu0
    %v285 = vpop.f32.mrf.mxu0
    %286 = vdwg.mxu0
    %287 = vmatprep.subr.bf16.mxu0 0
    %288 = vmatpush1.bf16.msra.mxu0 0
    %289 = vmatprep.subr.bf16.mxu0 0
    %290 = vmatpush1.bf16.msra.mxu0 0
    %291 = vmatprep.subr.bf16.mxu0 0
    %292 = vmatpush1.bf16.msra.mxu0 0
    %293 = vmatprep.subr.bf16.mxu0 0
    %294 = vmatpush1.bf16.msra.mxu0 0
    %295 = vmatprep.subr.bf16.mxu0 0
    %296 = vmatpush1.bf16.msra.mxu0 0
    %297 = vmatprep.subr.bf16.mxu0 0
    %298 = vmatpush1.bf16.msra.mxu0 0
    %299 = vmatprep.subr.bf16.mxu0 %v221
    %300 = vmatpush1.bf16.msra.mxu0 %v220
    %301 = vmatprep.subr.bf16.mxu0 %v213
    %302 = vmatpush1.bf16.msra.mxu0 %v212
    %303 = vmatprep.subr.bf16.mxu0 0
    %304 = vmatpush2.bf16.msra.mxu0 0
    %305 = vmatprep.subr.bf16.mxu0 0
    %306 = vmatpush2.bf16.msra.mxu0 0
    %307 = vmatprep.subr.bf16.mxu0 0
    %308 = vmatpush2.bf16.msra.mxu0 0
    %309 = vmatprep.subr.bf16.mxu0 0
    %310 = vmatpush2.bf16.msra.mxu0 0
    %311 = vmatprep.subr.bf16.mxu0 0
    %312 = vmatpush2.bf16.msra.mxu0 0
    %313 = vmatprep.subr.bf16.mxu0 0
    %314 = vmatpush2.bf16.msra.mxu0 0
    %315 = vmatprep.subr.bf16.mxu0 0
    %316 = vmatpush2.bf16.msra.mxu0 0
    %317 = vmatprep.subr.bf16.mxu0 0
    %318 = vmatpush2.bf16.msra.mxu0 0
    %319 = vmatprep.mubr.bf16.mxu0 0
    %320 = vmatmul.mubr.bf16.gmra.mxu0 %v244
    %v321 = vpop.f32.mrf.mxu0
    %v322 = vadd.f32 %v133, %v321
    %v323 = vpop.f32.mrf.mxu0
    %v324 = vadd.f32 %v137, %v323
    %v325 = vpop.f32.mrf.mxu0
    %v326 = vpop.f32.mrf.mxu0
    %327 = vdwg.mxu0
    %328 = vmatprep.subr.bf16.mxu0 0
    %329 = vmatpush1.bf16.msra.mxu0 0
    %330 = vmatprep.subr.bf16.mxu0 0
    %331 = vmatpush1.bf16.msra.mxu0 0
    %332 = vmatprep.subr.bf16.mxu0 0
    %333 = vmatpush1.bf16.msra.mxu0 0
    %334 = vmatprep.subr.bf16.mxu0 0
    %335 = vmatpush1.bf16.msra.mxu0 0
    %336 = vmatprep.subr.bf16.mxu0 0
    %337 = vmatpush1.bf16.msra.mxu0 0
    %338 = vmatprep.subr.bf16.mxu0 0
    %339 = vmatpush1.bf16.msra.mxu0 0
    %340 = vmatprep.subr.bf16.mxu0 %v223
    %341 = vmatpush1.bf16.msra.mxu0 %v222
    %342 = vmatprep.subr.bf16.mxu0 %v215
    %343 = vmatpush1.bf16.msra.mxu0 %v214
    %344 = vmatprep.subr.bf16.mxu0 0
    %345 = vmatpush2.bf16.msra.mxu0 0
    %346 = vmatprep.subr.bf16.mxu0 0
    %347 = vmatpush2.bf16.msra.mxu0 0
    %348 = vmatprep.subr.bf16.mxu0 0
    %349 = vmatpush2.bf16.msra.mxu0 0
    %350 = vmatprep.subr.bf16.mxu0 0
    %351 = vmatpush2.bf16.msra.mxu0 0
    %352 = vmatprep.subr.bf16.mxu0 0
    %353 = vmatpush2.bf16.msra.mxu0 0
    %354 = vmatprep.subr.bf16.mxu0 0
    %355 = vmatpush2.bf16.msra.mxu0 0
    %356 = vmatprep.subr.bf16.mxu0 0
    %357 = vmatpush2.bf16.msra.mxu0 0
    %358 = vmatprep.subr.bf16.mxu0 0
    %359 = vmatpush2.bf16.msra.mxu0 0
    %360 = vmatprep.mubr.bf16.mxu0 0
    %361 = vmatmul.mubr.bf16.gmra.mxu0 %v244
    %v362 = vpop.f32.mrf.mxu0
    %v363 = vadd.f32 %v141, %v362
    %v364 = vpop.f32.mrf.mxu0
    %v365 = vadd.f32 %v145, %v364
    %v366 = vpop.f32.mrf.mxu0
    %v367 = vpop.f32.mrf.mxu0
    %368 = vdwg.mxu0
    %369 = vmatprep.subr.bf16.mxu0 0
    %370 = vmatpush1.bf16.msra.mxu0 0
    %371 = vmatprep.subr.bf16.mxu0 0
    %372 = vmatpush1.bf16.msra.mxu0 0
    %373 = vmatprep.subr.bf16.mxu0 0
    %374 = vmatpush1.bf16.msra.mxu0 0
    %375 = vmatprep.subr.bf16.mxu0 0
    %376 = vmatpush1.bf16.msra.mxu0 0
    %377 = vmatprep.subr.bf16.mxu0 0
    %378 = vmatpush1.bf16.msra.mxu0 0
    %379 = vmatprep.subr.bf16.mxu0 0
    %380 = vmatpush1.bf16.msra.mxu0 0
    %381 = vmatprep.subr.bf16.mxu0 %v225
    %382 = vmatpush1.bf16.msra.mxu0 %v224
    %383 = vmatprep.subr.bf16.mxu0 %v217
    %384 = vmatpush1.bf16.msra.mxu0 %v216
    %385 = vmatprep.subr.bf16.mxu0 0
    %386 = vmatpush2.bf16.msra.mxu0 0
    %387 = vmatprep.subr.bf16.mxu0 0
    %388 = vmatpush2.bf16.msra.mxu0 0
    %389 = vmatprep.subr.bf16.mxu0 0
    %390 = vmatpush2.bf16.msra.mxu0 0
    %391 = vmatprep.subr.bf16.mxu0 0
    %392 = vmatpush2.bf16.msra.mxu0 0
    %393 = vmatprep.subr.bf16.mxu0 0
    %394 = vmatpush2.bf16.msra.mxu0 0
    %395 = vmatprep.subr.bf16.mxu0 0
    %396 = vmatpush2.bf16.msra.mxu0 0
    %397 = vmatprep.subr.bf16.mxu0 0
    %398 = vmatpush2.bf16.msra.mxu0 0
    %399 = vmatprep.subr.bf16.mxu0 0
    %400 = vmatpush2.bf16.msra.mxu0 0
    %401 = vmatprep.mubr.bf16.mxu0 0
    %402 = vmatmul.mubr.bf16.gmra.mxu0 %v244
    %v403 = vpop.f32.mrf.mxu0
    %v404 = vadd.f32 %v149, %v403
    %v405 = vpop.f32.mrf.mxu0
    %v406 = vadd.f32 %v153, %v405
    %v407 = vpop.f32.mrf.mxu0
    %v408 = vpop.f32.mrf.mxu0
    %409 = vdwg.mxu0
    %v410 = vmax.f32 %v281, 0.0
    %v411 = vmax.f32 %v283, 0.0
    %v412 = vmax.f32 %v322, 0.0
    %v413 = vmax.f32 %v324, 0.0
    %v414 = vmax.f32 %v363, 0.0
    %v415 = vmax.f32 %v365, 0.0
    %v416 = vmax.f32 %v404, 0.0
    %v417 = vmax.f32 %v406, 0.0
    %v418 = vpack.c.bf16 %v410, %v410
    %v419 = vpack.c.bf16 %v411, %v411
    %v420 = vpack.c.bf16 %v412, %v412
    %v421 = vpack.c.bf16 %v413, %v413
    %v422 = vpack.c.bf16 %v414, %v414
    %v423 = vpack.c.bf16 %v415, %v415
    %v424 = vpack.c.bf16 %v416, %v416
    %v425 = vpack.c.bf16 %v417, %v417
    %v426 = vld [vmem:[#allocation6] sm:$0xff]
    %v427 = vld [vmem:[#allocation6 + $0x8] sm:$0xff]
    %v428 = vld [vmem:[#allocation6 + $0x10] sm:$0xff]
    %v429 = vld [vmem:[#allocation6 + $0x18] sm:$0xff]
    %v430 = vld [vmem:[#allocation6 + $0x20] sm:$0xff]
    %v431 = vld [vmem:[#allocation6 + $0x28] sm:$0xff]
    %v432 = vld [vmem:[#allocation6 + $0x30] sm:$0xff]
    %v433 = vld [vmem:[#allocation6 + $0x38] sm:$0xff]
    %v434 = vld [vmem:[#allocation6 + $0x40] sm:$0xff]
    %v435 = vld [vmem:[#allocation6 + $0x48] sm:$0xff]
    %v436 = vld [vmem:[#allocation6 + $0x50] sm:$0xff]
    %v437 = vld [vmem:[#allocation6 + $0x58] sm:$0xff]
    %v438 = vld [vmem:[#allocation6 + $0x60] sm:$0xff]
    %v439 = vld [vmem:[#allocation6 + $0x68] sm:$0xff]
    %v440 = vld [vmem:[#allocation6 + $0x70] sm:$0xff]
    %v441 = vld [vmem:[#allocation6 + $0x78] sm:$0xff]
    %v442 = vld [vmem:[#allocation6 + $0x80] sm:$0xff]
    %v443 = vld [vmem:[#allocation6 + $0x88] sm:$0xff]
    %v444 = vld [vmem:[#allocation6 + $0x90] sm:$0xff]
    %v445 = vld [vmem:[#allocation6 + $0x98] sm:$0xff]
    %v446 = vld [vmem:[#allocation6 + $0xa0] sm:$0xff]
    %v447 = vld [vmem:[#allocation6 + $0xa8] sm:$0xff]
    %v448 = vld [vmem:[#allocation6 + $0xb0] sm:$0xff]
    %v449 = vld [vmem:[#allocation6 + $0xb8] sm:$0xff]
    %v450 = vld [vmem:[#allocation6 + $0xc0] sm:$0xff]
    %v451 = vld [vmem:[#allocation6 + $0xc8] sm:$0xff]
    %v452 = vld [vmem:[#allocation6 + $0xd0] sm:$0xff]
    %v453 = vld [vmem:[#allocation6 + $0xd8] sm:$0xff]
    %v454 = vld [vmem:[#allocation6 + $0xe0] sm:$0xff]
    %v455 = vld [vmem:[#allocation6 + $0xe8] sm:$0xff]
    %v456 = vld [vmem:[#allocation6 + $0xf0] sm:$0xff]
    %v457 = vld [vmem:[#allocation6 + $0xf8] sm:$0xff]
    %v458 = vld [vmem:[#allocation6 + $0x100] sm:$0xff]
    %v459 = vld [vmem:[#allocation6 + $0x108] sm:$0xff]
    %v460 = vld [vmem:[#allocation6 + $0x110] sm:$0xff]
    %v461 = vld [vmem:[#allocation6 + $0x118] sm:$0xff]
    %v462 = vld [vmem:[#allocation6 + $0x120] sm:$0xff]
    %v463 = vld [vmem:[#allocation6 + $0x128] sm:$0xff]
    %v464 = vld [vmem:[#allocation6 + $0x130] sm:$0xff]
    %v465 = vld [vmem:[#allocation6 + $0x138] sm:$0xff]
    %v466 = vld [vmem:[#allocation6 + $0x140] sm:$0xff]
    %v467 = vld [vmem:[#allocation6 + $0x148] sm:$0xff]
    %v468 = vld [vmem:[#allocation6 + $0x150] sm:$0xff]
    %v469 = vld [vmem:[#allocation6 + $0x158] sm:$0xff]
    %v470 = vld [vmem:[#allocation6 + $0x160] sm:$0xff]
    %v471 = vld [vmem:[#allocation6 + $0x168] sm:$0xff]
    %v472 = vld [vmem:[#allocation6 + $0x170] sm:$0xff]
    %v473 = vld [vmem:[#allocation6 + $0x178] sm:$0xff]
    %v474 = vld [vmem:[#allocation6 + $0x180] sm:$0xff]
    %v475 = vld [vmem:[#allocation6 + $0x188] sm:$0xff]
    %v476 = vld [vmem:[#allocation6 + $0x190] sm:$0xff]
    %v477 = vld [vmem:[#allocation6 + $0x198] sm:$0xff]
    %v478 = vld [vmem:[#allocation6 + $0x1a0] sm:$0xff]
    %v479 = vld [vmem:[#allocation6 + $0x1a8] sm:$0xff]
    %v480 = vld [vmem:[#allocation6 + $0x1b0] sm:$0xff]
    %v481 = vld [vmem:[#allocation6 + $0x1b8] sm:$0xff]
    %v482 = vld [vmem:[#allocation6 + $0x1c0] sm:$0xff]
    %v483 = vld [vmem:[#allocation6 + $0x1c8] sm:$0xff]
    %v484 = vld [vmem:[#allocation6 + $0x1d0] sm:$0xff]
    %v485 = vld [vmem:[#allocation6 + $0x1d8] sm:$0xff]
    %v486 = vld [vmem:[#allocation6 + $0x1e0] sm:$0xff]
    %v487 = vld [vmem:[#allocation6 + $0x1e8] sm:$0xff]
    %v488 = vld [vmem:[#allocation6 + $0x1f0] sm:$0xff]
    %v489 = vld [vmem:[#allocation6 + $0x1f8] sm:$0xff]
    %v490 = vld [vmem:[#allocation6 + $0x200] sm:$0xff]
    %v491 = vld [vmem:[#allocation6 + $0x208] sm:$0xff]
    %v492 = vld [vmem:[#allocation6 + $0x210] sm:$0xff]
    %v493 = vld [vmem:[#allocation6 + $0x218] sm:$0xff]
    %v494 = vld [vmem:[#allocation6 + $0x220] sm:$0xff]
    %v495 = vld [vmem:[#allocation6 + $0x228] sm:$0xff]
    %v496 = vld [vmem:[#allocation6 + $0x230] sm:$0xff]
    %v497 = vld [vmem:[#allocation6 + $0x238] sm:$0xff]
    %v498 = vld [vmem:[#allocation6 + $0x240] sm:$0xff]
    %v499 = vld [vmem:[#allocation6 + $0x248] sm:$0xff]
    %v500 = vld [vmem:[#allocation6 + $0x250] sm:$0xff]
    %v501 = vld [vmem:[#allocation6 + $0x258] sm:$0xff]
    %v502 = vld [vmem:[#allocation6 + $0x260] sm:$0xff]
    %v503 = vld [vmem:[#allocation6 + $0x268] sm:$0xff]
    %v504 = vld [vmem:[#allocation6 + $0x270] sm:$0xff]
    %v505 = vld [vmem:[#allocation6 + $0x278] sm:$0xff]
    %v506 = vld [vmem:[#allocation6 + $0x280] sm:$0xff]
    %v507 = vld [vmem:[#allocation6 + $0x288] sm:$0xff]
    %v508 = vld [vmem:[#allocation6 + $0x290] sm:$0xff]
    %v509 = vld [vmem:[#allocation6 + $0x298] sm:$0xff]
    %v510 = vld [vmem:[#allocation6 + $0x2a0] sm:$0xff]
    %v511 = vld [vmem:[#allocation6 + $0x2a8] sm:$0xff]
    %v512 = vld [vmem:[#allocation6 + $0x2b0] sm:$0xff]
    %v513 = vld [vmem:[#allocation6 + $0x2b8] sm:$0xff]
    %v514 = vld [vmem:[#allocation6 + $0x2c0] sm:$0xff]
    %v515 = vld [vmem:[#allocation6 + $0x2c8] sm:$0xff]
    %v516 = vld [vmem:[#allocation6 + $0x2d0] sm:$0xff]
    %v517 = vld [vmem:[#allocation6 + $0x2d8] sm:$0xff]
    %v518 = vld [vmem:[#allocation6 + $0x2e0] sm:$0xff]
    %v519 = vld [vmem:[#allocation6 + $0x2e8] sm:$0xff]
    %v520 = vld [vmem:[#allocation6 + $0x2f0] sm:$0xff]
    %v521 = vld [vmem:[#allocation6 + $0x2f8] sm:$0xff]
    %v522 = vld [vmem:[#allocation6 + $0x300] sm:$0xff]
    %v523 = vld [vmem:[#allocation6 + $0x308] sm:$0xff]
    %v524 = vld [vmem:[#allocation6 + $0x310] sm:$0xff]
    %v525 = vld [vmem:[#allocation6 + $0x318] sm:$0xff]
    %v526 = vld [vmem:[#allocation6 + $0x320] sm:$0xff]
    %v527 = vld [vmem:[#allocation6 + $0x328] sm:$0xff]
    %v528 = vld [vmem:[#allocation6 + $0x330] sm:$0xff]
    %v529 = vld [vmem:[#allocation6 + $0x338] sm:$0xff]
    %v530 = vld [vmem:[#allocation6 + $0x340] sm:$0xff]
    %v531 = vld [vmem:[#allocation6 + $0x348] sm:$0xff]
    %v532 = vld [vmem:[#allocation6 + $0x350] sm:$0xff]
    %v533 = vld [vmem:[#allocation6 + $0x358] sm:$0xff]
    %v534 = vld [vmem:[#allocation6 + $0x360] sm:$0xff]
    %v535 = vld [vmem:[#allocation6 + $0x368] sm:$0xff]
    %v536 = vld [vmem:[#allocation6 + $0x370] sm:$0xff]
    %v537 = vld [vmem:[#allocation6 + $0x378] sm:$0xff]
    %v538 = vld [vmem:[#allocation6 + $0x380] sm:$0xff]
    %v539 = vld [vmem:[#allocation6 + $0x388] sm:$0xff]
    %v540 = vld [vmem:[#allocation6 + $0x390] sm:$0xff]
    %v541 = vld [vmem:[#allocation6 + $0x398] sm:$0xff]
    %v542 = vld [vmem:[#allocation6 + $0x3a0] sm:$0xff]
    %v543 = vld [vmem:[#allocation6 + $0x3a8] sm:$0xff]
    %v544 = vld [vmem:[#allocation6 + $0x3b0] sm:$0xff]
    %v545 = vld [vmem:[#allocation6 + $0x3b8] sm:$0xff]
    %v546 = vld [vmem:[#allocation6 + $0x3c0] sm:$0xff]
    %v547 = vld [vmem:[#allocation6 + $0x3c8] sm:$0xff]
    %v548 = vld [vmem:[#allocation6 + $0x3d0] sm:$0xff]
    %v549 = vld [vmem:[#allocation6 + $0x3d8] sm:$0xff]
    %v550 = vld [vmem:[#allocation6 + $0x3e0] sm:$0xff]
    %v551 = vld [vmem:[#allocation6 + $0x3e8] sm:$0xff]
    %v552 = vld [vmem:[#allocation6 + $0x3f0] sm:$0xff]
    %v553 = vld [vmem:[#allocation6 + $0x3f8] sm:$0xff]
    %v554 = vld [vmem:[#allocation6 + $0x400] sm:$0xff]
    %v555 = vld [vmem:[#allocation6 + $0x408] sm:$0xff]
    %v556 = vld [vmem:[#allocation6 + $0x410] sm:$0xff]
    %v557 = vld [vmem:[#allocation6 + $0x418] sm:$0xff]
    %v558 = vld [vmem:[#allocation6 + $0x420] sm:$0xff]
    %v559 = vld [vmem:[#allocation6 + $0x428] sm:$0xff]
    %v560 = vld [vmem:[#allocation6 + $0x430] sm:$0xff]
    %v561 = vld [vmem:[#allocation6 + $0x438] sm:$0xff]
    %v562 = vld [vmem:[#allocation6 + $0x440] sm:$0xff]
    %v563 = vld [vmem:[#allocation6 + $0x448] sm:$0xff]
    %v564 = vld [vmem:[#allocation6 + $0x450] sm:$0xff]
    %v565 = vld [vmem:[#allocation6 + $0x458] sm:$0xff]
    %v566 = vld [vmem:[#allocation6 + $0x460] sm:$0xff]
    %v567 = vld [vmem:[#allocation6 + $0x468] sm:$0xff]
    %v568 = vld [vmem:[#allocation6 + $0x470] sm:$0xff]
    %v569 = vld [vmem:[#allocation6 + $0x478] sm:$0xff]
    %v570 = vld [vmem:[#allocation6 + $0x480] sm:$0xff]
    %v571 = vld [vmem:[#allocation6 + $0x488] sm:$0xff]
    %v572 = vld [vmem:[#allocation6 + $0x490] sm:$0xff]
    %v573 = vld [vmem:[#allocation6 + $0x498] sm:$0xff]
    %v574 = vld [vmem:[#allocation6 + $0x4a0] sm:$0xff]
    %v575 = vld [vmem:[#allocation6 + $0x4a8] sm:$0xff]
    %v576 = vld [vmem:[#allocation6 + $0x4b0] sm:$0xff]
    %v577 = vld [vmem:[#allocation6 + $0x4b8] sm:$0xff]
    %v578 = vld [vmem:[#allocation6 + $0x4c0] sm:$0xff]
    %v579 = vld [vmem:[#allocation6 + $0x4c8] sm:$0xff]
    %v580 = vld [vmem:[#allocation6 + $0x4d0] sm:$0xff]
    %v581 = vld [vmem:[#allocation6 + $0x4d8] sm:$0xff]
    %v582 = vld [vmem:[#allocation6 + $0x4e0] sm:$0xff]
    %v583 = vld [vmem:[#allocation6 + $0x4e8] sm:$0xff]
    %v584 = vld [vmem:[#allocation6 + $0x4f0] sm:$0xff]
    %v585 = vld [vmem:[#allocation6 + $0x4f8] sm:$0xff]
    %v586 = vld [vmem:[#allocation6 + $0x500] sm:$0xff]
    %v587 = vld [vmem:[#allocation6 + $0x508] sm:$0xff]
    %v588 = vld [vmem:[#allocation6 + $0x510] sm:$0xff]
    %v589 = vld [vmem:[#allocation6 + $0x518] sm:$0xff]
    %v590 = vld [vmem:[#allocation6 + $0x520] sm:$0xff]
    %v591 = vld [vmem:[#allocation6 + $0x528] sm:$0xff]
    %v592 = vld [vmem:[#allocation6 + $0x530] sm:$0xff]
    %v593 = vld [vmem:[#allocation6 + $0x538] sm:$0xff]
    %v594 = vld [vmem:[#allocation6 + $0x540] sm:$0xff]
    %v595 = vld [vmem:[#allocation6 + $0x548] sm:$0xff]
    %v596 = vld [vmem:[#allocation6 + $0x550] sm:$0xff]
    %v597 = vld [vmem:[#allocation6 + $0x558] sm:$0xff]
    %v598 = vld [vmem:[#allocation6 + $0x560] sm:$0xff]
    %v599 = vld [vmem:[#allocation6 + $0x568] sm:$0xff]
    %v600 = vld [vmem:[#allocation6 + $0x570] sm:$0xff]
    %v601 = vld [vmem:[#allocation6 + $0x578] sm:$0xff]
    %v602 = vld [vmem:[#allocation6 + $0x580] sm:$0xff]
    %v603 = vld [vmem:[#allocation6 + $0x588] sm:$0xff]
    %v604 = vld [vmem:[#allocation6 + $0x590] sm:$0xff]
    %v605 = vld [vmem:[#allocation6 + $0x598] sm:$0xff]
    %v606 = vld [vmem:[#allocation6 + $0x5a0] sm:$0xff]
    %v607 = vld [vmem:[#allocation6 + $0x5a8] sm:$0xff]
    %v608 = vld [vmem:[#allocation6 + $0x5b0] sm:$0xff]
    %v609 = vld [vmem:[#allocation6 + $0x5b8] sm:$0xff]
    %v610 = vld [vmem:[#allocation6 + $0x5c0] sm:$0xff]
    %v611 = vld [vmem:[#allocation6 + $0x5c8] sm:$0xff]
    %v612 = vld [vmem:[#allocation6 + $0x5d0] sm:$0xff]
    %v613 = vld [vmem:[#allocation6 + $0x5d8] sm:$0xff]
    %v614 = vld [vmem:[#allocation6 + $0x5e0] sm:$0xff]
    %v615 = vld [vmem:[#allocation6 + $0x5e8] sm:$0xff]
    %v616 = vld [vmem:[#allocation6 + $0x5f0] sm:$0xff]
    %v617 = vld [vmem:[#allocation6 + $0x5f8] sm:$0xff]
    %v618 = vld [vmem:[#allocation6 + $0x600] sm:$0xff]
    %v619 = vld [vmem:[#allocation6 + $0x608] sm:$0xff]
    %v620 = vld [vmem:[#allocation6 + $0x610] sm:$0xff]
    %v621 = vld [vmem:[#allocation6 + $0x618] sm:$0xff]
    %v622 = vld [vmem:[#allocation6 + $0x620] sm:$0xff]
    %v623 = vld [vmem:[#allocation6 + $0x628] sm:$0xff]
    %v624 = vld [vmem:[#allocation6 + $0x630] sm:$0xff]
    %v625 = vld [vmem:[#allocation6 + $0x638] sm:$0xff]
    %v626 = vld [vmem:[#allocation6 + $0x640] sm:$0xff]
    %v627 = vld [vmem:[#allocation6 + $0x648] sm:$0xff]
    %v628 = vld [vmem:[#allocation6 + $0x650] sm:$0xff]
    %v629 = vld [vmem:[#allocation6 + $0x658] sm:$0xff]
    %v630 = vld [vmem:[#allocation6 + $0x660] sm:$0xff]
    %v631 = vld [vmem:[#allocation6 + $0x668] sm:$0xff]
    %v632 = vld [vmem:[#allocation6 + $0x670] sm:$0xff]
    %v633 = vld [vmem:[#allocation6 + $0x678] sm:$0xff]
    %v634 = vld [vmem:[#allocation6 + $0x680] sm:$0xff]
    %v635 = vld [vmem:[#allocation6 + $0x688] sm:$0xff]
    %v636 = vld [vmem:[#allocation6 + $0x690] sm:$0xff]
    %v637 = vld [vmem:[#allocation6 + $0x698] sm:$0xff]
    %v638 = vld [vmem:[#allocation6 + $0x6a0] sm:$0xff]
    %v639 = vld [vmem:[#allocation6 + $0x6a8] sm:$0xff]
    %v640 = vld [vmem:[#allocation6 + $0x6b0] sm:$0xff]
    %v641 = vld [vmem:[#allocation6 + $0x6b8] sm:$0xff]
    %v642 = vld [vmem:[#allocation6 + $0x6c0] sm:$0xff]
    %v643 = vld [vmem:[#allocation6 + $0x6c8] sm:$0xff]
    %v644 = vld [vmem:[#allocation6 + $0x6d0] sm:$0xff]
    %v645 = vld [vmem:[#allocation6 + $0x6d8] sm:$0xff]
    %v646 = vld [vmem:[#allocation6 + $0x6e0] sm:$0xff]
    %v647 = vld [vmem:[#allocation6 + $0x6e8] sm:$0xff]
    %v648 = vld [vmem:[#allocation6 + $0x6f0] sm:$0xff]
    %v649 = vld [vmem:[#allocation6 + $0x6f8] sm:$0xff]
    %v650 = vld [vmem:[#allocation6 + $0x700] sm:$0xff]
    %v651 = vld [vmem:[#allocation6 + $0x708] sm:$0xff]
    %v652 = vld [vmem:[#allocation6 + $0x710] sm:$0xff]
    %v653 = vld [vmem:[#allocation6 + $0x718] sm:$0xff]
    %v654 = vld [vmem:[#allocation6 + $0x720] sm:$0xff]
    %v655 = vld [vmem:[#allocation6 + $0x728] sm:$0xff]
    %v656 = vld [vmem:[#allocation6 + $0x730] sm:$0xff]
    %v657 = vld [vmem:[#allocation6 + $0x738] sm:$0xff]
    %v658 = vld [vmem:[#allocation6 + $0x740] sm:$0xff]
    %v659 = vld [vmem:[#allocation6 + $0x748] sm:$0xff]
    %v660 = vld [vmem:[#allocation6 + $0x750] sm:$0xff]
    %v661 = vld [vmem:[#allocation6 + $0x758] sm:$0xff]
    %v662 = vld [vmem:[#allocation6 + $0x760] sm:$0xff]
    %v663 = vld [vmem:[#allocation6 + $0x768] sm:$0xff]
    %v664 = vld [vmem:[#allocation6 + $0x770] sm:$0xff]
    %v665 = vld [vmem:[#allocation6 + $0x778] sm:$0xff]
    %v666 = vld [vmem:[#allocation6 + $0x780] sm:$0xff]
    %v667 = vld [vmem:[#allocation6 + $0x788] sm:$0xff]
    %v668 = vld [vmem:[#allocation6 + $0x790] sm:$0xff]
    %v669 = vld [vmem:[#allocation6 + $0x798] sm:$0xff]
    %v670 = vld [vmem:[#allocation6 + $0x7a0] sm:$0xff]
    %v671 = vld [vmem:[#allocation6 + $0x7a8] sm:$0xff]
    %v672 = vld [vmem:[#allocation6 + $0x7b0] sm:$0xff]
    %v673 = vld [vmem:[#allocation6 + $0x7b8] sm:$0xff]
    %v674 = vld [vmem:[#allocation6 + $0x7c0] sm:$0xff]
    %v675 = vld [vmem:[#allocation6 + $0x7c8] sm:$0xff]
    %v676 = vld [vmem:[#allocation6 + $0x7d0] sm:$0xff]
    %v677 = vld [vmem:[#allocation6 + $0x7d8] sm:$0xff]
    %v678 = vld [vmem:[#allocation6 + $0x7e0] sm:$0xff]
    %v679 = vld [vmem:[#allocation6 + $0x7e8] sm:$0xff]
    %v680 = vld [vmem:[#allocation6 + $0x7f0] sm:$0xff]
    %v681 = vld [vmem:[#allocation6 + $0x7f8] sm:$0xff]
    %v682 = vld [vmem:[%s4] sm:$0xf]
    %v684 = vlaneseq
    %v685 = vshrl.u32 %v684, 7
    %v686 = vsub.s32 0, %v685
    %v687 = vrot.slane %v682, %v686
    %v688 = vlaneseq
    %v689 = vshrl.u32 %v688, 7
    %v690 = vsub.s32 1, %v689
    %v691 = vrot.slane %v682, %v690
    %v692 = vlaneseq
    %v693 = vshrl.u32 %v692, 7
    %v694 = vsub.s32 2, %v693
    %v695 = vrot.slane %v682, %v694
    %v696 = vlaneseq
    %v697 = vshrl.u32 %v696, 7
    %v698 = vsub.s32 3, %v697
    %v699 = vrot.slane %v682, %v698
    %v960 = vunpack.c.l.b16 %v426
    %v961 = vunpack.c.h.b16 %v426
    %v962 = vunpack.c.l.b16 %v427
    %v963 = vunpack.c.h.b16 %v427
    %v964 = vunpack.c.l.b16 %v428
    %v965 = vunpack.c.h.b16 %v428
    %v966 = vunpack.c.l.b16 %v429
    %v967 = vunpack.c.h.b16 %v429
    %v968 = vunpack.c.l.b16 %v430
    %v969 = vunpack.c.h.b16 %v430
    %v970 = vunpack.c.l.b16 %v431
    %v971 = vunpack.c.h.b16 %v431
    %v972 = vunpack.c.l.b16 %v432
    %v973 = vunpack.c.h.b16 %v432
    %v974 = vunpack.c.l.b16 %v433
    %v975 = vunpack.c.h.b16 %v433
    %v976 = vunpack.c.l.b16 %v434
    %v977 = vunpack.c.h.b16 %v434
    %v978 = vunpack.c.l.b16 %v435
    %v979 = vunpack.c.h.b16 %v435
    %v980 = vunpack.c.l.b16 %v436
    %v981 = vunpack.c.h.b16 %v436
    %v982 = vunpack.c.l.b16 %v437
    %v983 = vunpack.c.h.b16 %v437
    %v984 = vunpack.c.l.b16 %v438
    %v985 = vunpack.c.h.b16 %v438
    %v986 = vunpack.c.l.b16 %v439
    %v987 = vunpack.c.h.b16 %v439
    %v988 = vunpack.c.l.b16 %v440
    %v989 = vunpack.c.h.b16 %v440
    %v990 = vunpack.c.l.b16 %v441
    %v991 = vunpack.c.h.b16 %v441
    %v992 = vunpack.c.l.b16 %v442
    %v993 = vunpack.c.h.b16 %v442
    %v994 = vunpack.c.l.b16 %v443
    %v995 = vunpack.c.h.b16 %v443
    %v996 = vunpack.c.l.b16 %v444
    %v997 = vunpack.c.h.b16 %v444
    %v998 = vunpack.c.l.b16 %v445
    %v999 = vunpack.c.h.b16 %v445
    %v1000 = vunpack.c.l.b16 %v446
    %v1001 = vunpack.c.h.b16 %v446
    %v1002 = vunpack.c.l.b16 %v447
    %v1003 = vunpack.c.h.b16 %v447
    %v1004 = vunpack.c.l.b16 %v448
    %v1005 = vunpack.c.h.b16 %v448
    %v1006 = vunpack.c.l.b16 %v449
    %v1007 = vunpack.c.h.b16 %v449
    %v1008 = vunpack.c.l.b16 %v450
    %v1009 = vunpack.c.h.b16 %v450
    %v1010 = vunpack.c.l.b16 %v451
    %v1011 = vunpack.c.h.b16 %v451
    %v1012 = vunpack.c.l.b16 %v452
    %v1013 = vunpack.c.h.b16 %v452
    %v1014 = vunpack.c.l.b16 %v453
    %v1015 = vunpack.c.h.b16 %v453
    %v1016 = vunpack.c.l.b16 %v454
    %v1017 = vunpack.c.h.b16 %v454
    %v1018 = vunpack.c.l.b16 %v455
    %v1019 = vunpack.c.h.b16 %v455
    %v1020 = vunpack.c.l.b16 %v456
    %v1021 = vunpack.c.h.b16 %v456
    %v1022 = vunpack.c.l.b16 %v457
    %v1023 = vunpack.c.h.b16 %v457
    %v1024 = vunpack.c.l.b16 %v458
    %v1025 = vunpack.c.h.b16 %v458
    %v1026 = vunpack.c.l.b16 %v459
    %v1027 = vunpack.c.h.b16 %v459
    %v1028 = vunpack.c.l.b16 %v460
    %v1029 = vunpack.c.h.b16 %v460
    %v1030 = vunpack.c.l.b16 %v461
    %v1031 = vunpack.c.h.b16 %v461
    %v1032 = vunpack.c.l.b16 %v462
    %v1033 = vunpack.c.h.b16 %v462
    %v1034 = vunpack.c.l.b16 %v463
    %v1035 = vunpack.c.h.b16 %v463
    %v1036 = vunpack.c.l.b16 %v464
    %v1037 = vunpack.c.h.b16 %v464
    %v1038 = vunpack.c.l.b16 %v465
    %v1039 = vunpack.c.h.b16 %v465
    %v1040 = vunpack.c.l.b16 %v466
    %v1041 = vunpack.c.h.b16 %v466
    %v1042 = vunpack.c.l.b16 %v467
    %v1043 = vunpack.c.h.b16 %v467
    %v1044 = vunpack.c.l.b16 %v468
    %v1045 = vunpack.c.h.b16 %v468
    %v1046 = vunpack.c.l.b16 %v469
    %v1047 = vunpack.c.h.b16 %v469
    %v1048 = vunpack.c.l.b16 %v470
    %v1049 = vunpack.c.h.b16 %v470
    %v1050 = vunpack.c.l.b16 %v471
    %v1051 = vunpack.c.h.b16 %v471
    %v1052 = vunpack.c.l.b16 %v472
    %v1053 = vunpack.c.h.b16 %v472
    %v1054 = vunpack.c.l.b16 %v473
    %v1055 = vunpack.c.h.b16 %v473
    %v1056 = vunpack.c.l.b16 %v474
    %v1057 = vunpack.c.h.b16 %v474
    %v1058 = vunpack.c.l.b16 %v475
    %v1059 = vunpack.c.h.b16 %v475
    %v1060 = vunpack.c.l.b16 %v476
    %v1061 = vunpack.c.h.b16 %v476
    %v1062 = vunpack.c.l.b16 %v477
    %v1063 = vunpack.c.h.b16 %v477
    %v1064 = vunpack.c.l.b16 %v478
    %v1065 = vunpack.c.h.b16 %v478
    %v1066 = vunpack.c.l.b16 %v479
    %v1067 = vunpack.c.h.b16 %v479
    %v1068 = vunpack.c.l.b16 %v480
    %v1069 = vunpack.c.h.b16 %v480
    %v1070 = vunpack.c.l.b16 %v481
    %v1071 = vunpack.c.h.b16 %v481
    %v1072 = vunpack.c.l.b16 %v482
    %v1073 = vunpack.c.h.b16 %v482
    %v1074 = vunpack.c.l.b16 %v483
    %v1075 = vunpack.c.h.b16 %v483
    %v1076 = vunpack.c.l.b16 %v484
    %v1077 = vunpack.c.h.b16 %v484
    %v1078 = vunpack.c.l.b16 %v485
    %v1079 = vunpack.c.h.b16 %v485
    %v1080 = vunpack.c.l.b16 %v486
    %v1081 = vunpack.c.h.b16 %v486
    %v1082 = vunpack.c.l.b16 %v487
    %v1083 = vunpack.c.h.b16 %v487
    %v1084 = vunpack.c.l.b16 %v488
    %v1085 = vunpack.c.h.b16 %v488
    %v1086 = vunpack.c.l.b16 %v489
    %v1087 = vunpack.c.h.b16 %v489
    %v1088 = vunpack.c.l.b16 %v490
    %v1089 = vunpack.c.h.b16 %v490
    %v1090 = vunpack.c.l.b16 %v491
    %v1091 = vunpack.c.h.b16 %v491
    %v1092 = vunpack.c.l.b16 %v492
    %v1093 = vunpack.c.h.b16 %v492
    %v1094 = vunpack.c.l.b16 %v493
    %v1095 = vunpack.c.h.b16 %v493
    %v1096 = vunpack.c.l.b16 %v494
    %v1097 = vunpack.c.h.b16 %v494
    %v1098 = vunpack.c.l.b16 %v495
    %v1099 = vunpack.c.h.b16 %v495
    %v1100 = vunpack.c.l.b16 %v496
    %v1101 = vunpack.c.h.b16 %v496
    %v1102 = vunpack.c.l.b16 %v497
    %v1103 = vunpack.c.h.b16 %v497
    %v1104 = vunpack.c.l.b16 %v498
    %v1105 = vunpack.c.h.b16 %v498
    %v1106 = vunpack.c.l.b16 %v499
    %v1107 = vunpack.c.h.b16 %v499
    %v1108 = vunpack.c.l.b16 %v500
    %v1109 = vunpack.c.h.b16 %v500
    %v1110 = vunpack.c.l.b16 %v501
    %v1111 = vunpack.c.h.b16 %v501
    %v1112 = vunpack.c.l.b16 %v502
    %v1113 = vunpack.c.h.b16 %v502
    %v1114 = vunpack.c.l.b16 %v503
    %v1115 = vunpack.c.h.b16 %v503
    %v1116 = vunpack.c.l.b16 %v504
    %v1117 = vunpack.c.h.b16 %v504
    %v1118 = vunpack.c.l.b16 %v505
    %v1119 = vunpack.c.h.b16 %v505
    %v1120 = vunpack.c.l.b16 %v506
    %v1121 = vunpack.c.h.b16 %v506
    %v1122 = vunpack.c.l.b16 %v507
    %v1123 = vunpack.c.h.b16 %v507
    %v1124 = vunpack.c.l.b16 %v508
    %v1125 = vunpack.c.h.b16 %v508
    %v1126 = vunpack.c.l.b16 %v509
    %v1127 = vunpack.c.h.b16 %v509
    %v1128 = vunpack.c.l.b16 %v510
    %v1129 = vunpack.c.h.b16 %v510
    %v1130 = vunpack.c.l.b16 %v511
    %v1131 = vunpack.c.h.b16 %v511
    %v1132 = vunpack.c.l.b16 %v512
    %v1133 = vunpack.c.h.b16 %v512
    %v1134 = vunpack.c.l.b16 %v513
    %v1135 = vunpack.c.h.b16 %v513
    %v1136 = vunpack.c.l.b16 %v514
    %v1137 = vunpack.c.h.b16 %v514
    %v1138 = vunpack.c.l.b16 %v515
    %v1139 = vunpack.c.h.b16 %v515
    %v1140 = vunpack.c.l.b16 %v516
    %v1141 = vunpack.c.h.b16 %v516
    %v1142 = vunpack.c.l.b16 %v517
    %v1143 = vunpack.c.h.b16 %v517
    %v1144 = vunpack.c.l.b16 %v518
    %v1145 = vunpack.c.h.b16 %v518
    %v1146 = vunpack.c.l.b16 %v519
    %v1147 = vunpack.c.h.b16 %v519
    %v1148 = vunpack.c.l.b16 %v520
    %v1149 = vunpack.c.h.b16 %v520
    %v1150 = vunpack.c.l.b16 %v521
    %v1151 = vunpack.c.h.b16 %v521
    %v1152 = vunpack.c.l.b16 %v522
    %v1153 = vunpack.c.h.b16 %v522
    %v1154 = vunpack.c.l.b16 %v523
    %v1155 = vunpack.c.h.b16 %v523
    %v1156 = vunpack.c.l.b16 %v524
    %v1157 = vunpack.c.h.b16 %v524
    %v1158 = vunpack.c.l.b16 %v525
    %v1159 = vunpack.c.h.b16 %v525
    %v1160 = vunpack.c.l.b16 %v526
    %v1161 = vunpack.c.h.b16 %v526
    %v1162 = vunpack.c.l.b16 %v527
    %v1163 = vunpack.c.h.b16 %v527
    %v1164 = vunpack.c.l.b16 %v528
    %v1165 = vunpack.c.h.b16 %v528
    %v1166 = vunpack.c.l.b16 %v529
    %v1167 = vunpack.c.h.b16 %v529
    %v1168 = vunpack.c.l.b16 %v530
    %v1169 = vunpack.c.h.b16 %v530
    %v1170 = vunpack.c.l.b16 %v531
    %v1171 = vunpack.c.h.b16 %v531
    %v1172 = vunpack.c.l.b16 %v532
    %v1173 = vunpack.c.h.b16 %v532
    %v1174 = vunpack.c.l.b16 %v533
    %v1175 = vunpack.c.h.b16 %v533
    %v1176 = vunpack.c.l.b16 %v534
    %v1177 = vunpack.c.h.b16 %v534
    %v1178 = vunpack.c.l.b16 %v535
    %v1179 = vunpack.c.h.b16 %v535
    %v1180 = vunpack.c.l.b16 %v536
    %v1181 = vunpack.c.h.b16 %v536
    %v1182 = vunpack.c.l.b16 %v537
    %v1183 = vunpack.c.h.b16 %v537
    %v1184 = vunpack.c.l.b16 %v538
    %v1185 = vunpack.c.h.b16 %v538
    %v1186 = vunpack.c.l.b16 %v539
    %v1187 = vunpack.c.h.b16 %v539
    %v1188 = vunpack.c.l.b16 %v540
    %v1189 = vunpack.c.h.b16 %v540
    %v1190 = vunpack.c.l.b16 %v541
    %v1191 = vunpack.c.h.b16 %v541
    %v1192 = vunpack.c.l.b16 %v542
    %v1193 = vunpack.c.h.b16 %v542
    %v1194 = vunpack.c.l.b16 %v543
    %v1195 = vunpack.c.h.b16 %v543
    %v1196 = vunpack.c.l.b16 %v544
    %v1197 = vunpack.c.h.b16 %v544
    %v1198 = vunpack.c.l.b16 %v545
    %v1199 = vunpack.c.h.b16 %v545
    %v1200 = vunpack.c.l.b16 %v546
    %v1201 = vunpack.c.h.b16 %v546
    %v1202 = vunpack.c.l.b16 %v547
    %v1203 = vunpack.c.h.b16 %v547
    %v1204 = vunpack.c.l.b16 %v548
    %v1205 = vunpack.c.h.b16 %v548
    %v1206 = vunpack.c.l.b16 %v549
    %v1207 = vunpack.c.h.b16 %v549
    %v1208 = vunpack.c.l.b16 %v550
    %v1209 = vunpack.c.h.b16 %v550
    %v1210 = vunpack.c.l.b16 %v551
    %v1211 = vunpack.c.h.b16 %v551
    %v1212 = vunpack.c.l.b16 %v552
    %v1213 = vunpack.c.h.b16 %v552
    %v1214 = vunpack.c.l.b16 %v553
    %v1215 = vunpack.c.h.b16 %v553
    %v1216 = vunpack.c.l.b16 %v554
    %v1217 = vunpack.c.h.b16 %v554
    %v1218 = vunpack.c.l.b16 %v555
    %v1219 = vunpack.c.h.b16 %v555
    %v1220 = vunpack.c.l.b16 %v556
    %v1221 = vunpack.c.h.b16 %v556
    %v1222 = vunpack.c.l.b16 %v557
    %v1223 = vunpack.c.h.b16 %v557
    %v1224 = vunpack.c.l.b16 %v558
    %v1225 = vunpack.c.h.b16 %v558
    %v1226 = vunpack.c.l.b16 %v559
    %v1227 = vunpack.c.h.b16 %v559
    %v1228 = vunpack.c.l.b16 %v560
    %v1229 = vunpack.c.h.b16 %v560
    %v1230 = vunpack.c.l.b16 %v561
    %v1231 = vunpack.c.h.b16 %v561
    %v1232 = vunpack.c.l.b16 %v562
    %v1233 = vunpack.c.h.b16 %v562
    %v1234 = vunpack.c.l.b16 %v563
    %v1235 = vunpack.c.h.b16 %v563
    %v1236 = vunpack.c.l.b16 %v564
    %v1237 = vunpack.c.h.b16 %v564
    %v1238 = vunpack.c.l.b16 %v565
    %v1239 = vunpack.c.h.b16 %v565
    %v1240 = vunpack.c.l.b16 %v566
    %v1241 = vunpack.c.h.b16 %v566
    %v1242 = vunpack.c.l.b16 %v567
    %v1243 = vunpack.c.h.b16 %v567
    %v1244 = vunpack.c.l.b16 %v568
    %v1245 = vunpack.c.h.b16 %v568
    %v1246 = vunpack.c.l.b16 %v569
    %v1247 = vunpack.c.h.b16 %v569
    %v1248 = vunpack.c.l.b16 %v570
    %v1249 = vunpack.c.h.b16 %v570
    %v1250 = vunpack.c.l.b16 %v571
    %v1251 = vunpack.c.h.b16 %v571
    %v1252 = vunpack.c.l.b16 %v572
    %v1253 = vunpack.c.h.b16 %v572
    %v1254 = vunpack.c.l.b16 %v573
    %v1255 = vunpack.c.h.b16 %v573
    %v1256 = vunpack.c.l.b16 %v574
    %v1257 = vunpack.c.h.b16 %v574
    %v1258 = vunpack.c.l.b16 %v575
    %v1259 = vunpack.c.h.b16 %v575
    %v1260 = vunpack.c.l.b16 %v576
    %v1261 = vunpack.c.h.b16 %v576
    %v1262 = vunpack.c.l.b16 %v577
    %v1263 = vunpack.c.h.b16 %v577
    %v1264 = vunpack.c.l.b16 %v578
    %v1265 = vunpack.c.h.b16 %v578
    %v1266 = vunpack.c.l.b16 %v579
    %v1267 = vunpack.c.h.b16 %v579
    %v1268 = vunpack.c.l.b16 %v580
    %v1269 = vunpack.c.h.b16 %v580
    %v1270 = vunpack.c.l.b16 %v581
    %v1271 = vunpack.c.h.b16 %v581
    %v1272 = vunpack.c.l.b16 %v582
    %v1273 = vunpack.c.h.b16 %v582
    %v1274 = vunpack.c.l.b16 %v583
    %v1275 = vunpack.c.h.b16 %v583
    %v1276 = vunpack.c.l.b16 %v584
    %v1277 = vunpack.c.h.b16 %v584
    %v1278 = vunpack.c.l.b16 %v585
    %v1279 = vunpack.c.h.b16 %v585
    %v1280 = vunpack.c.l.b16 %v586
    %v1281 = vunpack.c.h.b16 %v586
    %v1282 = vunpack.c.l.b16 %v587
    %v1283 = vunpack.c.h.b16 %v587
    %v1284 = vunpack.c.l.b16 %v588
    %v1285 = vunpack.c.h.b16 %v588
    %v1286 = vunpack.c.l.b16 %v589
    %v1287 = vunpack.c.h.b16 %v589
    %v1288 = vunpack.c.l.b16 %v590
    %v1289 = vunpack.c.h.b16 %v590
    %v1290 = vunpack.c.l.b16 %v591
    %v1291 = vunpack.c.h.b16 %v591
    %v1292 = vunpack.c.l.b16 %v592
    %v1293 = vunpack.c.h.b16 %v592
    %v1294 = vunpack.c.l.b16 %v593
    %v1295 = vunpack.c.h.b16 %v593
    %v1296 = vunpack.c.l.b16 %v594
    %v1297 = vunpack.c.h.b16 %v594
    %v1298 = vunpack.c.l.b16 %v595
    %v1299 = vunpack.c.h.b16 %v595
    %v1300 = vunpack.c.l.b16 %v596
    %v1301 = vunpack.c.h.b16 %v596
    %v1302 = vunpack.c.l.b16 %v597
    %v1303 = vunpack.c.h.b16 %v597
    %v1304 = vunpack.c.l.b16 %v598
    %v1305 = vunpack.c.h.b16 %v598
    %v1306 = vunpack.c.l.b16 %v599
    %v1307 = vunpack.c.h.b16 %v599
    %v1308 = vunpack.c.l.b16 %v600
    %v1309 = vunpack.c.h.b16 %v600
    %v1310 = vunpack.c.l.b16 %v601
    %v1311 = vunpack.c.h.b16 %v601
    %v1312 = vunpack.c.l.b16 %v602
    %v1313 = vunpack.c.h.b16 %v602
    %v1314 = vunpack.c.l.b16 %v603
    %v1315 = vunpack.c.h.b16 %v603
    %v1316 = vunpack.c.l.b16 %v604
    %v1317 = vunpack.c.h.b16 %v604
    %v1318 = vunpack.c.l.b16 %v605
    %v1319 = vunpack.c.h.b16 %v605
    %v1320 = vunpack.c.l.b16 %v606
    %v1321 = vunpack.c.h.b16 %v606
    %v1322 = vunpack.c.l.b16 %v607
    %v1323 = vunpack.c.h.b16 %v607
    %v1324 = vunpack.c.l.b16 %v608
    %v1325 = vunpack.c.h.b16 %v608
    %v1326 = vunpack.c.l.b16 %v609
    %v1327 = vunpack.c.h.b16 %v609
    %v1328 = vunpack.c.l.b16 %v610
    %v1329 = vunpack.c.h.b16 %v610
    %v1330 = vunpack.c.l.b16 %v611
    %v1331 = vunpack.c.h.b16 %v611
    %v1332 = vunpack.c.l.b16 %v612
    %v1333 = vunpack.c.h.b16 %v612
    %v1334 = vunpack.c.l.b16 %v613
    %v1335 = vunpack.c.h.b16 %v613
    %v1336 = vunpack.c.l.b16 %v614
    %v1337 = vunpack.c.h.b16 %v614
    %v1338 = vunpack.c.l.b16 %v615
    %v1339 = vunpack.c.h.b16 %v615
    %v1340 = vunpack.c.l.b16 %v616
    %v1341 = vunpack.c.h.b16 %v616
    %v1342 = vunpack.c.l.b16 %v617
    %v1343 = vunpack.c.h.b16 %v617
    %v1344 = vunpack.c.l.b16 %v618
    %v1345 = vunpack.c.h.b16 %v618
    %v1346 = vunpack.c.l.b16 %v619
    %v1347 = vunpack.c.h.b16 %v619
    %v1348 = vunpack.c.l.b16 %v620
    %v1349 = vunpack.c.h.b16 %v620
    %v1350 = vunpack.c.l.b16 %v621
    %v1351 = vunpack.c.h.b16 %v621
    %v1352 = vunpack.c.l.b16 %v622
    %v1353 = vunpack.c.h.b16 %v622
    %v1354 = vunpack.c.l.b16 %v623
    %v1355 = vunpack.c.h.b16 %v623
    %v1356 = vunpack.c.l.b16 %v624
    %v1357 = vunpack.c.h.b16 %v624
    %v1358 = vunpack.c.l.b16 %v625
    %v1359 = vunpack.c.h.b16 %v625
    %v1360 = vunpack.c.l.b16 %v626
    %v1361 = vunpack.c.h.b16 %v626
    %v1362 = vunpack.c.l.b16 %v627
    %v1363 = vunpack.c.h.b16 %v627
    %v1364 = vunpack.c.l.b16 %v628
    %v1365 = vunpack.c.h.b16 %v628
    %v1366 = vunpack.c.l.b16 %v629
    %v1367 = vunpack.c.h.b16 %v629
    %v1368 = vunpack.c.l.b16 %v630
    %v1369 = vunpack.c.h.b16 %v630
    %v1370 = vunpack.c.l.b16 %v631
    %v1371 = vunpack.c.h.b16 %v631
    %v1372 = vunpack.c.l.b16 %v632
    %v1373 = vunpack.c.h.b16 %v632
    %v1374 = vunpack.c.l.b16 %v633
    %v1375 = vunpack.c.h.b16 %v633
    %v1376 = vunpack.c.l.b16 %v634
    %v1377 = vunpack.c.h.b16 %v634
    %v1378 = vunpack.c.l.b16 %v635
    %v1379 = vunpack.c.h.b16 %v635
    %v1380 = vunpack.c.l.b16 %v636
    %v1381 = vunpack.c.h.b16 %v636
    %v1382 = vunpack.c.l.b16 %v637
    %v1383 = vunpack.c.h.b16 %v637
    %v1384 = vunpack.c.l.b16 %v638
    %v1385 = vunpack.c.h.b16 %v638
    %v1386 = vunpack.c.l.b16 %v639
    %v1387 = vunpack.c.h.b16 %v639
    %v1388 = vunpack.c.l.b16 %v640
    %v1389 = vunpack.c.h.b16 %v640
    %v1390 = vunpack.c.l.b16 %v641
    %v1391 = vunpack.c.h.b16 %v641
    %v1392 = vunpack.c.l.b16 %v642
    %v1393 = vunpack.c.h.b16 %v642
    %v1394 = vunpack.c.l.b16 %v643
    %v1395 = vunpack.c.h.b16 %v643
    %v1396 = vunpack.c.l.b16 %v644
    %v1397 = vunpack.c.h.b16 %v644
    %v1398 = vunpack.c.l.b16 %v645
    %v1399 = vunpack.c.h.b16 %v645
    %v1400 = vunpack.c.l.b16 %v646
    %v1401 = vunpack.c.h.b16 %v646
    %v1402 = vunpack.c.l.b16 %v647
    %v1403 = vunpack.c.h.b16 %v647
    %v1404 = vunpack.c.l.b16 %v648
    %v1405 = vunpack.c.h.b16 %v648
    %v1406 = vunpack.c.l.b16 %v649
    %v1407 = vunpack.c.h.b16 %v649
    %v1408 = vunpack.c.l.b16 %v650
    %v1409 = vunpack.c.h.b16 %v650
    %v1410 = vunpack.c.l.b16 %v651
    %v1411 = vunpack.c.h.b16 %v651
    %v1412 = vunpack.c.l.b16 %v652
    %v1413 = vunpack.c.h.b16 %v652
    %v1414 = vunpack.c.l.b16 %v653
    %v1415 = vunpack.c.h.b16 %v653
    %v1416 = vunpack.c.l.b16 %v654
    %v1417 = vunpack.c.h.b16 %v654
    %v1418 = vunpack.c.l.b16 %v655
    %v1419 = vunpack.c.h.b16 %v655
    %v1420 = vunpack.c.l.b16 %v656
    %v1421 = vunpack.c.h.b16 %v656
    %v1422 = vunpack.c.l.b16 %v657
    %v1423 = vunpack.c.h.b16 %v657
    %v1424 = vunpack.c.l.b16 %v658
    %v1425 = vunpack.c.h.b16 %v658
    %v1426 = vunpack.c.l.b16 %v659
    %v1427 = vunpack.c.h.b16 %v659
    %v1428 = vunpack.c.l.b16 %v660
    %v1429 = vunpack.c.h.b16 %v660
    %v1430 = vunpack.c.l.b16 %v661
    %v1431 = vunpack.c.h.b16 %v661
    %v1432 = vunpack.c.l.b16 %v662
    %v1433 = vunpack.c.h.b16 %v662
    %v1434 = vunpack.c.l.b16 %v663
    %v1435 = vunpack.c.h.b16 %v663
    %v1436 = vunpack.c.l.b16 %v664
    %v1437 = vunpack.c.h.b16 %v664
    %v1438 = vunpack.c.l.b16 %v665
    %v1439 = vunpack.c.h.b16 %v665
    %v1440 = vunpack.c.l.b16 %v666
    %v1441 = vunpack.c.h.b16 %v666
    %v1442 = vunpack.c.l.b16 %v667
    %v1443 = vunpack.c.h.b16 %v667
    %v1444 = vunpack.c.l.b16 %v668
    %v1445 = vunpack.c.h.b16 %v668
    %v1446 = vunpack.c.l.b16 %v669
    %v1447 = vunpack.c.h.b16 %v669
    %v1448 = vunpack.c.l.b16 %v670
    %v1449 = vunpack.c.h.b16 %v670
    %v1450 = vunpack.c.l.b16 %v671
    %v1451 = vunpack.c.h.b16 %v671
    %v1452 = vunpack.c.l.b16 %v672
    %v1453 = vunpack.c.h.b16 %v672
    %v1454 = vunpack.c.l.b16 %v673
    %v1455 = vunpack.c.h.b16 %v673
    %v1456 = vunpack.c.l.b16 %v674
    %v1457 = vunpack.c.h.b16 %v674
    %v1458 = vunpack.c.l.b16 %v675
    %v1459 = vunpack.c.h.b16 %v675
    %v1460 = vunpack.c.l.b16 %v676
    %v1461 = vunpack.c.h.b16 %v676
    %v1462 = vunpack.c.l.b16 %v677
    %v1463 = vunpack.c.h.b16 %v677
    %v1464 = vunpack.c.l.b16 %v678
    %v1465 = vunpack.c.h.b16 %v678
    %v1466 = vunpack.c.l.b16 %v679
    %v1467 = vunpack.c.h.b16 %v679
    %v1468 = vunpack.c.l.b16 %v680
    %v1469 = vunpack.c.h.b16 %v680
    %v1470 = vunpack.c.l.b16 %v681
    %v1471 = vunpack.c.h.b16 %v681
    %v1472 = vpack.c.b16 %v964, %v960
    %v1473 = vpack.c.b16 %v965, %v961
    %v1474 = vpack.c.b16 %v966, %v962
    %v1475 = vpack.c.b16 %v967, %v963
    %v1476 = vpack.c.b16 %v972, %v968
    %v1477 = vpack.c.b16 %v973, %v969
    %v1478 = vpack.c.b16 %v974, %v970
    %v1479 = vpack.c.b16 %v975, %v971
    %v1480 = vpack.c.b16 %v980, %v976
    %v1481 = vpack.c.b16 %v981, %v977
    %v1482 = vpack.c.b16 %v982, %v978
    %v1483 = vpack.c.b16 %v983, %v979
    %v1484 = vpack.c.b16 %v988, %v984
    %v1485 = vpack.c.b16 %v989, %v985
    %v1486 = vpack.c.b16 %v990, %v986
    %v1487 = vpack.c.b16 %v991, %v987
    %v1488 = vpack.c.b16 %v996, %v992
    %v1489 = vpack.c.b16 %v997, %v993
    %v1490 = vpack.c.b16 %v998, %v994
    %v1491 = vpack.c.b16 %v999, %v995
    %v1492 = vpack.c.b16 %v1004, %v1000
    %v1493 = vpack.c.b16 %v1005, %v1001
    %v1494 = vpack.c.b16 %v1006, %v1002
    %v1495 = vpack.c.b16 %v1007, %v1003
    %v1496 = vpack.c.b16 %v1012, %v1008
    %v1497 = vpack.c.b16 %v1013, %v1009
    %v1498 = vpack.c.b16 %v1014, %v1010
    %v1499 = vpack.c.b16 %v1015, %v1011
    %v1500 = vpack.c.b16 %v1020, %v1016
    %v1501 = vpack.c.b16 %v1021, %v1017
    %v1502 = vpack.c.b16 %v1022, %v1018
    %v1503 = vpack.c.b16 %v1023, %v1019
    %v1504 = vpack.c.b16 %v1028, %v1024
    %v1505 = vpack.c.b16 %v1029, %v1025
    %v1506 = vpack.c.b16 %v1030, %v1026
    %v1507 = vpack.c.b16 %v1031, %v1027
    %v1508 = vpack.c.b16 %v1036, %v1032
    %v1509 = vpack.c.b16 %v1037, %v1033
    %v1510 = vpack.c.b16 %v1038, %v1034
    %v1511 = vpack.c.b16 %v1039, %v1035
    %v1512 = vpack.c.b16 %v1044, %v1040
    %v1513 = vpack.c.b16 %v1045, %v1041
    %v1514 = vpack.c.b16 %v1046, %v1042
    %v1515 = vpack.c.b16 %v1047, %v1043
    %v1516 = vpack.c.b16 %v1052, %v1048
    %v1517 = vpack.c.b16 %v1053, %v1049
    %v1518 = vpack.c.b16 %v1054, %v1050
    %v1519 = vpack.c.b16 %v1055, %v1051
    %v1520 = vpack.c.b16 %v1060, %v1056
    %v1521 = vpack.c.b16 %v1061, %v1057
    %v1522 = vpack.c.b16 %v1062, %v1058
    %v1523 = vpack.c.b16 %v1063, %v1059
    %v1524 = vpack.c.b16 %v1068, %v1064
    %v1525 = vpack.c.b16 %v1069, %v1065
    %v1526 = vpack.c.b16 %v1070, %v1066
    %v1527 = vpack.c.b16 %v1071, %v1067
    %v1528 = vpack.c.b16 %v1076, %v1072
    %v1529 = vpack.c.b16 %v1077, %v1073
    %v1530 = vpack.c.b16 %v1078, %v1074
    %v1531 = vpack.c.b16 %v1079, %v1075
    %v1532 = vpack.c.b16 %v1084, %v1080
    %v1533 = vpack.c.b16 %v1085, %v1081
    %v1534 = vpack.c.b16 %v1086, %v1082
    %v1535 = vpack.c.b16 %v1087, %v1083
    %v1536 = vpack.c.b16 %v1092, %v1088
    %v1537 = vpack.c.b16 %v1093, %v1089
    %v1538 = vpack.c.b16 %v1094, %v1090
    %v1539 = vpack.c.b16 %v1095, %v1091
    %v1540 = vpack.c.b16 %v1100, %v1096
    %v1541 = vpack.c.b16 %v1101, %v1097
    %v1542 = vpack.c.b16 %v1102, %v1098
    %v1543 = vpack.c.b16 %v1103, %v1099
    %v1544 = vpack.c.b16 %v1108, %v1104
    %v1545 = vpack.c.b16 %v1109, %v1105
    %v1546 = vpack.c.b16 %v1110, %v1106
    %v1547 = vpack.c.b16 %v1111, %v1107
    %v1548 = vpack.c.b16 %v1116, %v1112
    %v1549 = vpack.c.b16 %v1117, %v1113
    %v1550 = vpack.c.b16 %v1118, %v1114
    %v1551 = vpack.c.b16 %v1119, %v1115
    %v1552 = vpack.c.b16 %v1124, %v1120
    %v1553 = vpack.c.b16 %v1125, %v1121
    %v1554 = vpack.c.b16 %v1126, %v1122
    %v1555 = vpack.c.b16 %v1127, %v1123
    %v1556 = vpack.c.b16 %v1132, %v1128
    %v1557 = vpack.c.b16 %v1133, %v1129
    %v1558 = vpack.c.b16 %v1134, %v1130
    %v1559 = vpack.c.b16 %v1135, %v1131
    %v1560 = vpack.c.b16 %v1140, %v1136
    %v1561 = vpack.c.b16 %v1141, %v1137
    %v1562 = vpack.c.b16 %v1142, %v1138
    %v1563 = vpack.c.b16 %v1143, %v1139
    %v1564 = vpack.c.b16 %v1148, %v1144
    %v1565 = vpack.c.b16 %v1149, %v1145
    %v1566 = vpack.c.b16 %v1150, %v1146
    %v1567 = vpack.c.b16 %v1151, %v1147
    %v1568 = vpack.c.b16 %v1156, %v1152
    %v1569 = vpack.c.b16 %v1157, %v1153
    %v1570 = vpack.c.b16 %v1158, %v1154
    %v1571 = vpack.c.b16 %v1159, %v1155
    %v1572 = vpack.c.b16 %v1164, %v1160
    %v1573 = vpack.c.b16 %v1165, %v1161
    %v1574 = vpack.c.b16 %v1166, %v1162
    %v1575 = vpack.c.b16 %v1167, %v1163
    %v1576 = vpack.c.b16 %v1172, %v1168
    %v1577 = vpack.c.b16 %v1173, %v1169
    %v1578 = vpack.c.b16 %v1174, %v1170
    %v1579 = vpack.c.b16 %v1175, %v1171
    %v1580 = vpack.c.b16 %v1180, %v1176
    %v1581 = vpack.c.b16 %v1181, %v1177
    %v1582 = vpack.c.b16 %v1182, %v1178
    %v1583 = vpack.c.b16 %v1183, %v1179
    %v1584 = vpack.c.b16 %v1188, %v1184
    %v1585 = vpack.c.b16 %v1189, %v1185
    %v1586 = vpack.c.b16 %v1190, %v1186
    %v1587 = vpack.c.b16 %v1191, %v1187
    %v1588 = vpack.c.b16 %v1196, %v1192
    %v1589 = vpack.c.b16 %v1197, %v1193
    %v1590 = vpack.c.b16 %v1198, %v1194
    %v1591 = vpack.c.b16 %v1199, %v1195
    %v1592 = vpack.c.b16 %v1204, %v1200
    %v1593 = vpack.c.b16 %v1205, %v1201
    %v1594 = vpack.c.b16 %v1206, %v1202
    %v1595 = vpack.c.b16 %v1207, %v1203
    %v1596 = vpack.c.b16 %v1212, %v1208
    %v1597 = vpack.c.b16 %v1213, %v1209
    %v1598 = vpack.c.b16 %v1214, %v1210
    %v1599 = vpack.c.b16 %v1215, %v1211
    %v1600 = vpack.c.b16 %v1220, %v1216
    %v1601 = vpack.c.b16 %v1221, %v1217
    %v1602 = vpack.c.b16 %v1222, %v1218
    %v1603 = vpack.c.b16 %v1223, %v1219
    %v1604 = vpack.c.b16 %v1228, %v1224
    %v1605 = vpack.c.b16 %v1229, %v1225
    %v1606 = vpack.c.b16 %v1230, %v1226
    %v1607 = vpack.c.b16 %v1231, %v1227
    %v1608 = vpack.c.b16 %v1236, %v1232
    %v1609 = vpack.c.b16 %v1237, %v1233
    %v1610 = vpack.c.b16 %v1238, %v1234
    %v1611 = vpack.c.b16 %v1239, %v1235
    %v1612 = vpack.c.b16 %v1244, %v1240
    %v1613 = vpack.c.b16 %v1245, %v1241
    %v1614 = vpack.c.b16 %v1246, %v1242
    %v1615 = vpack.c.b16 %v1247, %v1243
    %v1616 = vpack.c.b16 %v1252, %v1248
    %v1617 = vpack.c.b16 %v1253, %v1249
    %v1618 = vpack.c.b16 %v1254, %v1250
    %v1619 = vpack.c.b16 %v1255, %v1251
    %v1620 = vpack.c.b16 %v1260, %v1256
    %v1621 = vpack.c.b16 %v1261, %v1257
    %v1622 = vpack.c.b16 %v1262, %v1258
    %v1623 = vpack.c.b16 %v1263, %v1259
    %v1624 = vpack.c.b16 %v1268, %v1264
    %v1625 = vpack.c.b16 %v1269, %v1265
    %v1626 = vpack.c.b16 %v1270, %v1266
    %v1627 = vpack.c.b16 %v1271, %v1267
    %v1628 = vpack.c.b16 %v1276, %v1272
    %v1629 = vpack.c.b16 %v1277, %v1273
    %v1630 = vpack.c.b16 %v1278, %v1274
    %v1631 = vpack.c.b16 %v1279, %v1275
    %v1632 = vpack.c.b16 %v1284, %v1280
    %v1633 = vpack.c.b16 %v1285, %v1281
    %v1634 = vpack.c.b16 %v1286, %v1282
    %v1635 = vpack.c.b16 %v1287, %v1283
    %v1636 = vpack.c.b16 %v1292, %v1288
    %v1637 = vpack.c.b16 %v1293, %v1289
    %v1638 = vpack.c.b16 %v1294, %v1290
    %v1639 = vpack.c.b16 %v1295, %v1291
    %v1640 = vpack.c.b16 %v1300, %v1296
    %v1641 = vpack.c.b16 %v1301, %v1297
    %v1642 = vpack.c.b16 %v1302, %v1298
    %v1643 = vpack.c.b16 %v1303, %v1299
    %v1644 = vpack.c.b16 %v1308, %v1304
    %v1645 = vpack.c.b16 %v1309, %v1305
    %v1646 = vpack.c.b16 %v1310, %v1306
    %v1647 = vpack.c.b16 %v1311, %v1307
    %v1648 = vpack.c.b16 %v1316, %v1312
    %v1649 = vpack.c.b16 %v1317, %v1313
    %v1650 = vpack.c.b16 %v1318, %v1314
    %v1651 = vpack.c.b16 %v1319, %v1315
    %v1652 = vpack.c.b16 %v1324, %v1320
    %v1653 = vpack.c.b16 %v1325, %v1321
    %v1654 = vpack.c.b16 %v1326, %v1322
    %v1655 = vpack.c.b16 %v1327, %v1323
    %v1656 = vpack.c.b16 %v1332, %v1328
    %v1657 = vpack.c.b16 %v1333, %v1329
    %v1658 = vpack.c.b16 %v1334, %v1330
    %v1659 = vpack.c.b16 %v1335, %v1331
    %v1660 = vpack.c.b16 %v1340, %v1336
    %v1661 = vpack.c.b16 %v1341, %v1337
    %v1662 = vpack.c.b16 %v1342, %v1338
    %v1663 = vpack.c.b16 %v1343, %v1339
    %v1664 = vpack.c.b16 %v1348, %v1344
    %v1665 = vpack.c.b16 %v1349, %v1345
    %v1666 = vpack.c.b16 %v1350, %v1346
    %v1667 = vpack.c.b16 %v1351, %v1347
    %v1668 = vpack.c.b16 %v1356, %v1352
    %v1669 = vpack.c.b16 %v1357, %v1353
    %v1670 = vpack.c.b16 %v1358, %v1354
    %v1671 = vpack.c.b16 %v1359, %v1355
    %v1672 = vpack.c.b16 %v1364, %v1360
    %v1673 = vpack.c.b16 %v1365, %v1361
    %v1674 = vpack.c.b16 %v1366, %v1362
    %v1675 = vpack.c.b16 %v1367, %v1363
    %v1676 = vpack.c.b16 %v1372, %v1368
    %v1677 = vpack.c.b16 %v1373, %v1369
    %v1678 = vpack.c.b16 %v1374, %v1370
    %v1679 = vpack.c.b16 %v1375, %v1371
    %v1680 = vpack.c.b16 %v1380, %v1376
    %v1681 = vpack.c.b16 %v1381, %v1377
    %v1682 = vpack.c.b16 %v1382, %v1378
    %v1683 = vpack.c.b16 %v1383, %v1379
    %v1684 = vpack.c.b16 %v1388, %v1384
    %v1685 = vpack.c.b16 %v1389, %v1385
    %v1686 = vpack.c.b16 %v1390, %v1386
    %v1687 = vpack.c.b16 %v1391, %v1387
    %v1688 = vpack.c.b16 %v1396, %v1392
    %v1689 = vpack.c.b16 %v1397, %v1393
    %v1690 = vpack.c.b16 %v1398, %v1394
    %v1691 = vpack.c.b16 %v1399, %v1395
    %v1692 = vpack.c.b16 %v1404, %v1400
    %v1693 = vpack.c.b16 %v1405, %v1401
    %v1694 = vpack.c.b16 %v1406, %v1402
    %v1695 = vpack.c.b16 %v1407, %v1403
    %v1696 = vpack.c.b16 %v1412, %v1408
    %v1697 = vpack.c.b16 %v1413, %v1409
    %v1698 = vpack.c.b16 %v1414, %v1410
    %v1699 = vpack.c.b16 %v1415, %v1411
    %v1700 = vpack.c.b16 %v1420, %v1416
    %v1701 = vpack.c.b16 %v1421, %v1417
    %v1702 = vpack.c.b16 %v1422, %v1418
    %v1703 = vpack.c.b16 %v1423, %v1419
    %v1704 = vpack.c.b16 %v1428, %v1424
    %v1705 = vpack.c.b16 %v1429, %v1425
    %v1706 = vpack.c.b16 %v1430, %v1426
    %v1707 = vpack.c.b16 %v1431, %v1427
    %v1708 = vpack.c.b16 %v1436, %v1432
    %v1709 = vpack.c.b16 %v1437, %v1433
    %v1710 = vpack.c.b16 %v1438, %v1434
    %v1711 = vpack.c.b16 %v1439, %v1435
    %v1712 = vpack.c.b16 %v1444, %v1440
    %v1713 = vpack.c.b16 %v1445, %v1441
    %v1714 = vpack.c.b16 %v1446, %v1442
    %v1715 = vpack.c.b16 %v1447, %v1443
    %v1716 = vpack.c.b16 %v1452, %v1448
    %v1717 = vpack.c.b16 %v1453, %v1449
    %v1718 = vpack.c.b16 %v1454, %v1450
    %v1719 = vpack.c.b16 %v1455, %v1451
    %v1720 = vpack.c.b16 %v1460, %v1456
    %v1721 = vpack.c.b16 %v1461, %v1457
    %v1722 = vpack.c.b16 %v1462, %v1458
    %v1723 = vpack.c.b16 %v1463, %v1459
    %v1724 = vpack.c.b16 %v1468, %v1464
    %v1725 = vpack.c.b16 %v1469, %v1465
    %v1726 = vpack.c.b16 %v1470, %v1466
    %v1727 = vpack.c.b16 %v1471, %v1467
    %1984 = vmatprep.subr.bf16.mxu0 %v1501
    %1985 = vmatpush1.bf16.msra.mxu0 %v1500
    %1986 = vmatprep.subr.bf16.mxu0 %v1497
    %1987 = vmatpush1.bf16.msra.mxu0 %v1496
    %1988 = vmatprep.subr.bf16.mxu0 %v1493
    %1989 = vmatpush1.bf16.msra.mxu0 %v1492
    %1990 = vmatprep.subr.bf16.mxu0 %v1489
    %1991 = vmatpush1.bf16.msra.mxu0 %v1488
    %1992 = vmatprep.subr.bf16.mxu0 %v1485
    %1993 = vmatpush1.bf16.msra.mxu0 %v1484
    %1994 = vmatprep.subr.bf16.mxu0 %v1481
    %1995 = vmatpush1.bf16.msra.mxu0 %v1480
    %1996 = vmatprep.subr.bf16.mxu0 %v1477
    %1997 = vmatpush1.bf16.msra.mxu0 %v1476
    %1998 = vmatprep.subr.bf16.mxu0 %v1473
    %1999 = vmatpush1.bf16.msra.mxu0 %v1472
    %2000 = vmatprep.subr.bf16.mxu0 %v1533
    %2001 = vmatpush2.bf16.msra.mxu0 %v1532
    %2002 = vmatprep.subr.bf16.mxu0 %v1529
    %2003 = vmatpush2.bf16.msra.mxu0 %v1528
    %2004 = vmatprep.subr.bf16.mxu0 %v1525
    %2005 = vmatpush2.bf16.msra.mxu0 %v1524
    %2006 = vmatprep.subr.bf16.mxu0 %v1521
    %2007 = vmatpush2.bf16.msra.mxu0 %v1520
    %2008 = vmatprep.subr.bf16.mxu0 %v1517
    %2009 = vmatpush2.bf16.msra.mxu0 %v1516
    %2010 = vmatprep.subr.bf16.mxu0 %v1513
    %2011 = vmatpush2.bf16.msra.mxu0 %v1512
    %2012 = vmatprep.subr.bf16.mxu0 %v1509
    %2013 = vmatpush2.bf16.msra.mxu0 %v1508
    %2014 = vmatprep.subr.bf16.mxu0 %v1505
    %2015 = vmatpush2.bf16.msra.mxu0 %v1504
    %2016 = vmatprep.mubr.bf16.mxu0 %v419
    %2017 = vmatmul.mubr.bf16.gmra.mxu0 %v418
    %v2018 = vpop.f32.mrf.mxu0
    %v2019 = vadd.f32 %v687, %v2018
    %v2020 = vpop.f32.mrf.mxu0
    %v2021 = vadd.f32 %v691, %v2020
    %v2022 = vpop.f32.mrf.mxu0
    %v2023 = vpop.f32.mrf.mxu0
    %2024 = vdwg.mxu0
    %2025 = vmatprep.subr.bf16.mxu0 %v1565
    %2026 = vmatpush1.bf16.msra.mxu0 %v1564
    %2027 = vmatprep.subr.bf16.mxu0 %v1561
    %2028 = vmatpush1.bf16.msra.mxu0 %v1560
    %2029 = vmatprep.subr.bf16.mxu0 %v1557
    %2030 = vmatpush1.bf16.msra.mxu0 %v1556
    %2031 = vmatprep.subr.bf16.mxu0 %v1553
    %2032 = vmatpush1.bf16.msra.mxu0 %v1552
    %2033 = vmatprep.subr.bf16.mxu0 %v1549
    %2034 = vmatpush1.bf16.msra.mxu0 %v1548
    %2035 = vmatprep.subr.bf16.mxu0 %v1545
    %2036 = vmatpush1.bf16.msra.mxu0 %v1544
    %2037 = vmatprep.subr.bf16.mxu0 %v1541
    %2038 = vmatpush1.bf16.msra.mxu0 %v1540
    %2039 = vmatprep.subr.bf16.mxu0 %v1537
    %2040 = vmatpush1.bf16.msra.mxu0 %v1536
    %2041 = vmatprep.subr.bf16.mxu0 %v1597
    %2042 = vmatpush2.bf16.msra.mxu0 %v1596
    %2043 = vmatprep.subr.bf16.mxu0 %v1593
    %2044 = vmatpush2.bf16.msra.mxu0 %v1592
    %2045 = vmatprep.subr.bf16.mxu0 %v1589
    %2046 = vmatpush2.bf16.msra.mxu0 %v1588
    %2047 = vmatprep.subr.bf16.mxu0 %v1585
    %2048 = vmatpush2.bf16.msra.mxu0 %v1584
    %2049 = vmatprep.subr.bf16.mxu0 %v1581
    %2050 = vmatpush2.bf16.msra.mxu0 %v1580
    %2051 = vmatprep.subr.bf16.mxu0 %v1577
    %2052 = vmatpush2.bf16.msra.mxu0 %v1576
    %2053 = vmatprep.subr.bf16.mxu0 %v1573
    %2054 = vmatpush2.bf16.msra.mxu0 %v1572
    %2055 = vmatprep.subr.bf16.mxu0 %v1569
    %2056 = vmatpush2.bf16.msra.mxu0 %v1568
    %2057 = vmatprep.mubr.bf16.mxu0 %v421
    %2058 = vmatmul.mubr.bf16.gmra.mxu0 %v420
    %v2059 = vpop.f32.mrf.mxu0
    %v2060 = vadd.f32 %v2019, %v2059
    %v2061 = vpop.f32.mrf.mxu0
    %v2062 = vadd.f32 %v2021, %v2061
    %v2063 = vpop.f32.mrf.mxu0
    %v2064 = vpop.f32.mrf.mxu0
    %2065 = vdwg.mxu0
    %2066 = vmatprep.subr.bf16.mxu0 %v1629
    %2067 = vmatpush1.bf16.msra.mxu0 %v1628
    %2068 = vmatprep.subr.bf16.mxu0 %v1625
    %2069 = vmatpush1.bf16.msra.mxu0 %v1624
    %2070 = vmatprep.subr.bf16.mxu0 %v1621
    %2071 = vmatpush1.bf16.msra.mxu0 %v1620
    %2072 = vmatprep.subr.bf16.mxu0 %v1617
    %2073 = vmatpush1.bf16.msra.mxu0 %v1616
    %2074 = vmatprep.subr.bf16.mxu0 %v1613
    %2075 = vmatpush1.bf16.msra.mxu0 %v1612
    %2076 = vmatprep.subr.bf16.mxu0 %v1609
    %2077 = vmatpush1.bf16.msra.mxu0 %v1608
    %2078 = vmatprep.subr.bf16.mxu0 %v1605
    %2079 = vmatpush1.bf16.msra.mxu0 %v1604
    %2080 = vmatprep.subr.bf16.mxu0 %v1601
    %2081 = vmatpush1.bf16.msra.mxu0 %v1600
    %2082 = vmatprep.subr.bf16.mxu0 %v1661
    %2083 = vmatpush2.bf16.msra.mxu0 %v1660
    %2084 = vmatprep.subr.bf16.mxu0 %v1657
    %2085 = vmatpush2.bf16.msra.mxu0 %v1656
    %2086 = vmatprep.subr.bf16.mxu0 %v1653
    %2087 = vmatpush2.bf16.msra.mxu0 %v1652
    %2088 = vmatprep.subr.bf16.mxu0 %v1649
    %2089 = vmatpush2.bf16.msra.mxu0 %v1648
    %2090 = vmatprep.subr.bf16.mxu0 %v1645
    %2091 = vmatpush2.bf16.msra.mxu0 %v1644
    %2092 = vmatprep.subr.bf16.mxu0 %v1641
    %2093 = vmatpush2.bf16.msra.mxu0 %v1640
    %2094 = vmatprep.subr.bf16.mxu0 %v1637
    %2095 = vmatpush2.bf16.msra.mxu0 %v1636
    %2096 = vmatprep.subr.bf16.mxu0 %v1633
    %2097 = vmatpush2.bf16.msra.mxu0 %v1632
    %2098 = vmatprep.mubr.bf16.mxu0 %v423
    %2099 = vmatmul.mubr.bf16.gmra.mxu0 %v422
    %v2100 = vpop.f32.mrf.mxu0
    %v2101 = vadd.f32 %v2060, %v2100
    %v2102 = vpop.f32.mrf.mxu0
    %v2103 = vadd.f32 %v2062, %v2102
    %v2104 = vpop.f32.mrf.mxu0
    %v2105 = vpop.f32.mrf.mxu0
    %2106 = vdwg.mxu0
    %2107 = vmatprep.subr.bf16.mxu0 %v1693
    %2108 = vmatpush1.bf16.msra.mxu0 %v1692
    %2109 = vmatprep.subr.bf16.mxu0 %v1689
    %2110 = vmatpush1.bf16.msra.mxu0 %v1688
    %2111 = vmatprep.subr.bf16.mxu0 %v1685
    %2112 = vmatpush1.bf16.msra.mxu0 %v1684
    %2113 = vmatprep.subr.bf16.mxu0 %v1681
    %2114 = vmatpush1.bf16.msra.mxu0 %v1680
    %2115 = vmatprep.subr.bf16.mxu0 %v1677
    %2116 = vmatpush1.bf16.msra.mxu0 %v1676
    %2117 = vmatprep.subr.bf16.mxu0 %v1673
    %2118 = vmatpush1.bf16.msra.mxu0 %v1672
    %2119 = vmatprep.subr.bf16.mxu0 %v1669
    %2120 = vmatpush1.bf16.msra.mxu0 %v1668
    %2121 = vmatprep.subr.bf16.mxu0 %v1665
    %2122 = vmatpush1.bf16.msra.mxu0 %v1664
    %2123 = vmatprep.subr.bf16.mxu0 %v1725
    %2124 = vmatpush2.bf16.msra.mxu0 %v1724
    %2125 = vmatprep.subr.bf16.mxu0 %v1721
    %2126 = vmatpush2.bf16.msra.mxu0 %v1720
    %2127 = vmatprep.subr.bf16.mxu0 %v1717
    %2128 = vmatpush2.bf16.msra.mxu0 %v1716
    %2129 = vmatprep.subr.bf16.mxu0 %v1713
    %2130 = vmatpush2.bf16.msra.mxu0 %v1712
    %2131 = vmatprep.subr.bf16.mxu0 %v1709
    %2132 = vmatpush2.bf16.msra.mxu0 %v1708
    %2133 = vmatprep.subr.bf16.mxu0 %v1705
    %2134 = vmatpush2.bf16.msra.mxu0 %v1704
    %2135 = vmatprep.subr.bf16.mxu0 %v1701
    %2136 = vmatpush2.bf16.msra.mxu0 %v1700
    %2137 = vmatprep.subr.bf16.mxu0 %v1697
    %2138 = vmatpush2.bf16.msra.mxu0 %v1696
    %2139 = vmatprep.mubr.bf16.mxu0 %v425
    %2140 = vmatmul.mubr.bf16.gmra.mxu0 %v424
    %v2141 = vpop.f32.mrf.mxu0
    %v2142 = vadd.f32 %v2101, %v2141
    %v2143 = vpop.f32.mrf.mxu0
    %v2144 = vadd.f32 %v2103, %v2143
    %v2145 = vpop.f32.mrf.mxu0
    %v2146 = vpop.f32.mrf.mxu0
    %2147 = vdwg.mxu0
    %2148 = vmatprep.subr.bf16.mxu0 %v1503
    %2149 = vmatpush1.bf16.msra.mxu0 %v1502
    %2150 = vmatprep.subr.bf16.mxu0 %v1499
    %2151 = vmatpush1.bf16.msra.mxu0 %v1498
    %2152 = vmatprep.subr.bf16.mxu0 %v1495
    %2153 = vmatpush1.bf16.msra.mxu0 %v1494
    %2154 = vmatprep.subr.bf16.mxu0 %v1491
    %2155 = vmatpush1.bf16.msra.mxu0 %v1490
    %2156 = vmatprep.subr.bf16.mxu0 %v1487
    %2157 = vmatpush1.bf16.msra.mxu0 %v1486
    %2158 = vmatprep.subr.bf16.mxu0 %v1483
    %2159 = vmatpush1.bf16.msra.mxu0 %v1482
    %2160 = vmatprep.subr.bf16.mxu0 %v1479
    %2161 = vmatpush1.bf16.msra.mxu0 %v1478
    %2162 = vmatprep.subr.bf16.mxu0 %v1475
    %2163 = vmatpush1.bf16.msra.mxu0 %v1474
    %2164 = vmatprep.subr.bf16.mxu0 %v1535
    %2165 = vmatpush2.bf16.msra.mxu0 %v1534
    %2166 = vmatprep.subr.bf16.mxu0 %v1531
    %2167 = vmatpush2.bf16.msra.mxu0 %v1530
    %2168 = vmatprep.subr.bf16.mxu0 %v1527
    %2169 = vmatpush2.bf16.msra.mxu0 %v1526
    %2170 = vmatprep.subr.bf16.mxu0 %v1523
    %2171 = vmatpush2.bf16.msra.mxu0 %v1522
    %2172 = vmatprep.subr.bf16.mxu0 %v1519
    %2173 = vmatpush2.bf16.msra.mxu0 %v1518
    %2174 = vmatprep.subr.bf16.mxu0 %v1515
    %2175 = vmatpush2.bf16.msra.mxu0 %v1514
    %2176 = vmatprep.subr.bf16.mxu0 %v1511
    %2177 = vmatpush2.bf16.msra.mxu0 %v1510
    %2178 = vmatprep.subr.bf16.mxu0 %v1507
    %2179 = vmatpush2.bf16.msra.mxu0 %v1506
    %2180 = vmatprep.mubr.bf16.mxu0 %v419
    %2181 = vmatmul.mubr.bf16.gmra.mxu0 %v418
    %v2182 = vpop.f32.mrf.mxu0
    %v2183 = vadd.f32 %v695, %v2182
    %v2184 = vpop.f32.mrf.mxu0
    %v2185 = vadd.f32 %v699, %v2184
    %v2186 = vpop.f32.mrf.mxu0
    %v2187 = vpop.f32.mrf.mxu0
    %2188 = vdwg.mxu0
    %2189 = vmatprep.subr.bf16.mxu0 %v1567
    %2190 = vmatpush1.bf16.msra.mxu0 %v1566
    %2191 = vmatprep.subr.bf16.mxu0 %v1563
    %2192 = vmatpush1.bf16.msra.mxu0 %v1562
    %2193 = vmatprep.subr.bf16.mxu0 %v1559
    %2194 = vmatpush1.bf16.msra.mxu0 %v1558
    %2195 = vmatprep.subr.bf16.mxu0 %v1555
    %2196 = vmatpush1.bf16.msra.mxu0 %v1554
    %2197 = vmatprep.subr.bf16.mxu0 %v1551
    %2198 = vmatpush1.bf16.msra.mxu0 %v1550
    %2199 = vmatprep.subr.bf16.mxu0 %v1547
    %2200 = vmatpush1.bf16.msra.mxu0 %v1546
    %2201 = vmatprep.subr.bf16.mxu0 %v1543
    %2202 = vmatpush1.bf16.msra.mxu0 %v1542
    %2203 = vmatprep.subr.bf16.mxu0 %v1539
    %2204 = vmatpush1.bf16.msra.mxu0 %v1538
    %2205 = vmatprep.subr.bf16.mxu0 %v1599
    %2206 = vmatpush2.bf16.msra.mxu0 %v1598
    %2207 = vmatprep.subr.bf16.mxu0 %v1595
    %2208 = vmatpush2.bf16.msra.mxu0 %v1594
    %2209 = vmatprep.subr.bf16.mxu0 %v1591
    %2210 = vmatpush2.bf16.msra.mxu0 %v1590
    %2211 = vmatprep.subr.bf16.mxu0 %v1587
    %2212 = vmatpush2.bf16.msra.mxu0 %v1586
    %2213 = vmatprep.subr.bf16.mxu0 %v1583
    %2214 = vmatpush2.bf16.msra.mxu0 %v1582
    %2215 = vmatprep.subr.bf16.mxu0 %v1579
    %2216 = vmatpush2.bf16.msra.mxu0 %v1578
    %2217 = vmatprep.subr.bf16.mxu0 %v1575
    %2218 = vmatpush2.bf16.msra.mxu0 %v1574
    %2219 = vmatprep.subr.bf16.mxu0 %v1571
    %2220 = vmatpush2.bf16.msra.mxu0 %v1570
    %2221 = vmatprep.mubr.bf16.mxu0 %v421
    %2222 = vmatmul.mubr.bf16.gmra.mxu0 %v420
    %v2223 = vpop.f32.mrf.mxu0
    %v2224 = vadd.f32 %v2183, %v2223
    %v2225 = vpop.f32.mrf.mxu0
    %v2226 = vadd.f32 %v2185, %v2225
    %v2227 = vpop.f32.mrf.mxu0
    %v2228 = vpop.f32.mrf.mxu0
    %2229 = vdwg.mxu0
    %2230 = vmatprep.subr.bf16.mxu0 %v1631
    %2231 = vmatpush1.bf16.msra.mxu0 %v1630
    %2232 = vmatprep.subr.bf16.mxu0 %v1627
    %2233 = vmatpush1.bf16.msra.mxu0 %v1626
    %2234 = vmatprep.subr.bf16.mxu0 %v1623
    %2235 = vmatpush1.bf16.msra.mxu0 %v1622
    %2236 = vmatprep.subr.bf16.mxu0 %v1619
    %2237 = vmatpush1.bf16.msra.mxu0 %v1618
    %2238 = vmatprep.subr.bf16.mxu0 %v1615
    %2239 = vmatpush1.bf16.msra.mxu0 %v1614
    %2240 = vmatprep.subr.bf16.mxu0 %v1611
    %2241 = vmatpush1.bf16.msra.mxu0 %v1610
    %2242 = vmatprep.subr.bf16.mxu0 %v1607
    %2243 = vmatpush1.bf16.msra.mxu0 %v1606
    %2244 = vmatprep.subr.bf16.mxu0 %v1603
    %2245 = vmatpush1.bf16.msra.mxu0 %v1602
    %2246 = vmatprep.subr.bf16.mxu0 %v1663
    %2247 = vmatpush2.bf16.msra.mxu0 %v1662
    %2248 = vmatprep.subr.bf16.mxu0 %v1659
    %2249 = vmatpush2.bf16.msra.mxu0 %v1658
    %2250 = vmatprep.subr.bf16.mxu0 %v1655
    %2251 = vmatpush2.bf16.msra.mxu0 %v1654
    %2252 = vmatprep.subr.bf16.mxu0 %v1651
    %2253 = vmatpush2.bf16.msra.mxu0 %v1650
    %2254 = vmatprep.subr.bf16.mxu0 %v1647
    %2255 = vmatpush2.bf16.msra.mxu0 %v1646
    %2256 = vmatprep.subr.bf16.mxu0 %v1643
    %2257 = vmatpush2.bf16.msra.mxu0 %v1642
    %2258 = vmatprep.subr.bf16.mxu0 %v1639
    %2259 = vmatpush2.bf16.msra.mxu0 %v1638
    %2260 = vmatprep.subr.bf16.mxu0 %v1635
    %2261 = vmatpush2.bf16.msra.mxu0 %v1634
    %2262 = vmatprep.mubr.bf16.mxu0 %v423
    %2263 = vmatmul.mubr.bf16.gmra.mxu0 %v422
    %v2264 = vpop.f32.mrf.mxu0
    %v2265 = vadd.f32 %v2224, %v2264
    %v2266 = vpop.f32.mrf.mxu0
    %v2267 = vadd.f32 %v2226, %v2266
    %v2268 = vpop.f32.mrf.mxu0
    %v2269 = vpop.f32.mrf.mxu0
    %2270 = vdwg.mxu0
    %2271 = vmatprep.subr.bf16.mxu0 %v1695
    %2272 = vmatpush1.bf16.msra.mxu0 %v1694
    %2273 = vmatprep.subr.bf16.mxu0 %v1691
    %2274 = vmatpush1.bf16.msra.mxu0 %v1690
    %2275 = vmatprep.subr.bf16.mxu0 %v1687
    %2276 = vmatpush1.bf16.msra.mxu0 %v1686
    %2277 = vmatprep.subr.bf16.mxu0 %v1683
    %2278 = vmatpush1.bf16.msra.mxu0 %v1682
    %2279 = vmatprep.subr.bf16.mxu0 %v1679
    %2280 = vmatpush1.bf16.msra.mxu0 %v1678
    %2281 = vmatprep.subr.bf16.mxu0 %v1675
    %2282 = vmatpush1.bf16.msra.mxu0 %v1674
    %2283 = vmatprep.subr.bf16.mxu0 %v1671
    %2284 = vmatpush1.bf16.msra.mxu0 %v1670
    %2285 = vmatprep.subr.bf16.mxu0 %v1667
    %2286 = vmatpush1.bf16.msra.mxu0 %v1666
    %2287 = vmatprep.subr.bf16.mxu0 %v1727
    %2288 = vmatpush2.bf16.msra.mxu0 %v1726
    %2289 = vmatprep.subr.bf16.mxu0 %v1723
    %2290 = vmatpush2.bf16.msra.mxu0 %v1722
    %2291 = vmatprep.subr.bf16.mxu0 %v1719
    %2292 = vmatpush2.bf16.msra.mxu0 %v1718
    %2293 = vmatprep.subr.bf16.mxu0 %v1715
    %2294 = vmatpush2.bf16.msra.mxu0 %v1714
    %2295 = vmatprep.subr.bf16.mxu0 %v1711
    %2296 = vmatpush2.bf16.msra.mxu0 %v1710
    %2297 = vmatprep.subr.bf16.mxu0 %v1707
    %2298 = vmatpush2.bf16.msra.mxu0 %v1706
    %2299 = vmatprep.subr.bf16.mxu0 %v1703
    %2300 = vmatpush2.bf16.msra.mxu0 %v1702
    %2301 = vmatprep.subr.bf16.mxu0 %v1699
    %2302 = vmatpush2.bf16.msra.mxu0 %v1698
    %2303 = vmatprep.mubr.bf16.mxu0 %v425
    %2304 = vmatmul.mubr.bf16.gmra.mxu0 %v424
    %v2305 = vpop.f32.mrf.mxu0
    %v2306 = vadd.f32 %v2265, %v2305
    %v2307 = vpop.f32.mrf.mxu0
    %v2308 = vadd.f32 %v2267, %v2307
    %v2309 = vpop.f32.mrf.mxu0
    %v2310 = vpop.f32.mrf.mxu0
    %2311 = vdwg.mxu0
    %v2312 = vmax.f32 %v2142, 0.0
    %v2313 = vmax.f32 %v2144, 0.0
    %v2314 = vmax.f32 %v2306, 0.0
    %v2315 = vmax.f32 %v2308, 0.0
    %v2316 = vpack.c.bf16 %v2312, %v2312
    %v2317 = vpack.c.bf16 %v2313, %v2313
    %v2318 = vpack.c.bf16 %v2314, %v2314
    %v2319 = vpack.c.bf16 %v2315, %v2315
    %v2320 = vld [vmem:[#allocation8] sm:$0xff]
    %v2321 = vld [vmem:[#allocation8 + $0x8] sm:$0xff]
    %v2322 = vld [vmem:[#allocation8 + $0x10] sm:$0xff]
    %v2323 = vld [vmem:[#allocation8 + $0x18] sm:$0xff]
    %v2324 = vld [vmem:[#allocation8 + $0x20] sm:$0xff]
    %v2325 = vld [vmem:[#allocation8 + $0x28] sm:$0xff]
    %v2326 = vld [vmem:[#allocation8 + $0x30] sm:$0xff]
    %v2327 = vld [vmem:[#allocation8 + $0x38] sm:$0xff]
    %v2328 = vld [vmem:[#allocation8 + $0x40] sm:$0xff]
    %v2329 = vld [vmem:[#allocation8 + $0x48] sm:$0xff]
    %v2330 = vld [vmem:[#allocation8 + $0x50] sm:$0xff]
    %v2331 = vld [vmem:[#allocation8 + $0x58] sm:$0xff]
    %v2332 = vld [vmem:[#allocation8 + $0x60] sm:$0xff]
    %v2333 = vld [vmem:[#allocation8 + $0x68] sm:$0xff]
    %v2334 = vld [vmem:[#allocation8 + $0x70] sm:$0xff]
    %v2335 = vld [vmem:[#allocation8 + $0x78] sm:$0xff]
    %v2336 = vld [vmem:[#allocation8 + $0x80] sm:$0xff]
    %v2337 = vld [vmem:[#allocation8 + $0x88] sm:$0xff]
    %v2338 = vld [vmem:[#allocation8 + $0x90] sm:$0xff]
    %v2339 = vld [vmem:[#allocation8 + $0x98] sm:$0xff]
    %v2340 = vld [vmem:[#allocation8 + $0xa0] sm:$0xff]
    %v2341 = vld [vmem:[#allocation8 + $0xa8] sm:$0xff]
    %v2342 = vld [vmem:[#allocation8 + $0xb0] sm:$0xff]
    %v2343 = vld [vmem:[#allocation8 + $0xb8] sm:$0xff]
    %v2344 = vld [vmem:[#allocation8 + $0xc0] sm:$0xff]
    %v2345 = vld [vmem:[#allocation8 + $0xc8] sm:$0xff]
    %v2346 = vld [vmem:[#allocation8 + $0xd0] sm:$0xff]
    %v2347 = vld [vmem:[#allocation8 + $0xd8] sm:$0xff]
    %v2348 = vld [vmem:[#allocation8 + $0xe0] sm:$0xff]
    %v2349 = vld [vmem:[#allocation8 + $0xe8] sm:$0xff]
    %v2350 = vld [vmem:[#allocation8 + $0xf0] sm:$0xff]
    %v2351 = vld [vmem:[#allocation8 + $0xf8] sm:$0xff]
    %v2352 = vld [vmem:[#allocation8 + $0x100] sm:$0xff]
    %v2353 = vld [vmem:[#allocation8 + $0x108] sm:$0xff]
    %v2354 = vld [vmem:[#allocation8 + $0x110] sm:$0xff]
    %v2355 = vld [vmem:[#allocation8 + $0x118] sm:$0xff]
    %v2356 = vld [vmem:[#allocation8 + $0x120] sm:$0xff]
    %v2357 = vld [vmem:[#allocation8 + $0x128] sm:$0xff]
    %v2358 = vld [vmem:[#allocation8 + $0x130] sm:$0xff]
    %v2359 = vld [vmem:[#allocation8 + $0x138] sm:$0xff]
    %v2360 = vld [vmem:[#allocation8 + $0x140] sm:$0xff]
    %v2361 = vld [vmem:[#allocation8 + $0x148] sm:$0xff]
    %v2362 = vld [vmem:[#allocation8 + $0x150] sm:$0xff]
    %v2363 = vld [vmem:[#allocation8 + $0x158] sm:$0xff]
    %v2364 = vld [vmem:[#allocation8 + $0x160] sm:$0xff]
    %v2365 = vld [vmem:[#allocation8 + $0x168] sm:$0xff]
    %v2366 = vld [vmem:[#allocation8 + $0x170] sm:$0xff]
    %v2367 = vld [vmem:[#allocation8 + $0x178] sm:$0xff]
    %v2368 = vld [vmem:[#allocation8 + $0x180] sm:$0xff]
    %v2369 = vld [vmem:[#allocation8 + $0x188] sm:$0xff]
    %v2370 = vld [vmem:[#allocation8 + $0x190] sm:$0xff]
    %v2371 = vld [vmem:[#allocation8 + $0x198] sm:$0xff]
    %v2372 = vld [vmem:[#allocation8 + $0x1a0] sm:$0xff]
    %v2373 = vld [vmem:[#allocation8 + $0x1a8] sm:$0xff]
    %v2374 = vld [vmem:[#allocation8 + $0x1b0] sm:$0xff]
    %v2375 = vld [vmem:[#allocation8 + $0x1b8] sm:$0xff]
    %v2376 = vld [vmem:[#allocation8 + $0x1c0] sm:$0xff]
    %v2377 = vld [vmem:[#allocation8 + $0x1c8] sm:$0xff]
    %v2378 = vld [vmem:[#allocation8 + $0x1d0] sm:$0xff]
    %v2379 = vld [vmem:[#allocation8 + $0x1d8] sm:$0xff]
    %v2380 = vld [vmem:[#allocation8 + $0x1e0] sm:$0xff]
    %v2381 = vld [vmem:[#allocation8 + $0x1e8] sm:$0xff]
    %v2382 = vld [vmem:[#allocation8 + $0x1f0] sm:$0xff]
    %v2383 = vld [vmem:[#allocation8 + $0x1f8] sm:$0xff]
    %v2384 = vld [vmem:[%s6] sm:$0x3]
    %v2386 = vlaneseq
    %v2387 = vshrl.u32 %v2386, 7
    %v2388 = vsub.s32 0, %v2387
    %v2389 = vrot.slane %v2384, %v2388
    %v2390 = vlaneseq
    %v2391 = vshrl.u32 %v2390, 7
    %v2392 = vsub.s32 1, %v2391
    %v2393 = vrot.slane %v2384, %v2392
    %v2460 = vunpack.c.l.b16 %v2320
    %v2461 = vunpack.c.h.b16 %v2320
    %v2462 = vunpack.c.l.b16 %v2321
    %v2463 = vunpack.c.h.b16 %v2321
    %v2464 = vunpack.c.l.b16 %v2322
    %v2465 = vunpack.c.h.b16 %v2322
    %v2466 = vunpack.c.l.b16 %v2323
    %v2467 = vunpack.c.h.b16 %v2323
    %v2468 = vunpack.c.l.b16 %v2324
    %v2469 = vunpack.c.h.b16 %v2324
    %v2470 = vunpack.c.l.b16 %v2325
    %v2471 = vunpack.c.h.b16 %v2325
    %v2472 = vunpack.c.l.b16 %v2326
    %v2473 = vunpack.c.h.b16 %v2326
    %v2474 = vunpack.c.l.b16 %v2327
    %v2475 = vunpack.c.h.b16 %v2327
    %v2476 = vunpack.c.l.b16 %v2328
    %v2477 = vunpack.c.h.b16 %v2328
    %v2478 = vunpack.c.l.b16 %v2329
    %v2479 = vunpack.c.h.b16 %v2329
    %v2480 = vunpack.c.l.b16 %v2330
    %v2481 = vunpack.c.h.b16 %v2330
    %v2482 = vunpack.c.l.b16 %v2331
    %v2483 = vunpack.c.h.b16 %v2331
    %v2484 = vunpack.c.l.b16 %v2332
    %v2485 = vunpack.c.h.b16 %v2332
    %v2486 = vunpack.c.l.b16 %v2333
    %v2487 = vunpack.c.h.b16 %v2333
    %v2488 = vunpack.c.l.b16 %v2334
    %v2489 = vunpack.c.h.b16 %v2334
    %v2490 = vunpack.c.l.b16 %v2335
    %v2491 = vunpack.c.h.b16 %v2335
    %v2492 = vunpack.c.l.b16 %v2336
    %v2493 = vunpack.c.h.b16 %v2336
    %v2494 = vunpack.c.l.b16 %v2337
    %v2495 = vunpack.c.h.b16 %v2337
    %v2496 = vunpack.c.l.b16 %v2338
    %v2497 = vunpack.c.h.b16 %v2338
    %v2498 = vunpack.c.l.b16 %v2339
    %v2499 = vunpack.c.h.b16 %v2339
    %v2500 = vunpack.c.l.b16 %v2340
    %v2501 = vunpack.c.h.b16 %v2340
    %v2502 = vunpack.c.l.b16 %v2341
    %v2503 = vunpack.c.h.b16 %v2341
    %v2504 = vunpack.c.l.b16 %v2342
    %v2505 = vunpack.c.h.b16 %v2342
    %v2506 = vunpack.c.l.b16 %v2343
    %v2507 = vunpack.c.h.b16 %v2343
    %v2508 = vunpack.c.l.b16 %v2344
    %v2509 = vunpack.c.h.b16 %v2344
    %v2510 = vunpack.c.l.b16 %v2345
    %v2511 = vunpack.c.h.b16 %v2345
    %v2512 = vunpack.c.l.b16 %v2346
    %v2513 = vunpack.c.h.b16 %v2346
    %v2514 = vunpack.c.l.b16 %v2347
    %v2515 = vunpack.c.h.b16 %v2347
    %v2516 = vunpack.c.l.b16 %v2348
    %v2517 = vunpack.c.h.b16 %v2348
    %v2518 = vunpack.c.l.b16 %v2349
    %v2519 = vunpack.c.h.b16 %v2349
    %v2520 = vunpack.c.l.b16 %v2350
    %v2521 = vunpack.c.h.b16 %v2350
    %v2522 = vunpack.c.l.b16 %v2351
    %v2523 = vunpack.c.h.b16 %v2351
    %v2524 = vunpack.c.l.b16 %v2352
    %v2525 = vunpack.c.h.b16 %v2352
    %v2526 = vunpack.c.l.b16 %v2353
    %v2527 = vunpack.c.h.b16 %v2353
    %v2528 = vunpack.c.l.b16 %v2354
    %v2529 = vunpack.c.h.b16 %v2354
    %v2530 = vunpack.c.l.b16 %v2355
    %v2531 = vunpack.c.h.b16 %v2355
    %v2532 = vunpack.c.l.b16 %v2356
    %v2533 = vunpack.c.h.b16 %v2356
    %v2534 = vunpack.c.l.b16 %v2357
    %v2535 = vunpack.c.h.b16 %v2357
    %v2536 = vunpack.c.l.b16 %v2358
    %v2537 = vunpack.c.h.b16 %v2358
    %v2538 = vunpack.c.l.b16 %v2359
    %v2539 = vunpack.c.h.b16 %v2359
    %v2540 = vunpack.c.l.b16 %v2360
    %v2541 = vunpack.c.h.b16 %v2360
    %v2542 = vunpack.c.l.b16 %v2361
    %v2543 = vunpack.c.h.b16 %v2361
    %v2544 = vunpack.c.l.b16 %v2362
    %v2545 = vunpack.c.h.b16 %v2362
    %v2546 = vunpack.c.l.b16 %v2363
    %v2547 = vunpack.c.h.b16 %v2363
    %v2548 = vunpack.c.l.b16 %v2364
    %v2549 = vunpack.c.h.b16 %v2364
    %v2550 = vunpack.c.l.b16 %v2365
    %v2551 = vunpack.c.h.b16 %v2365
    %v2552 = vunpack.c.l.b16 %v2366
    %v2553 = vunpack.c.h.b16 %v2366
    %v2554 = vunpack.c.l.b16 %v2367
    %v2555 = vunpack.c.h.b16 %v2367
    %v2556 = vunpack.c.l.b16 %v2368
    %v2557 = vunpack.c.h.b16 %v2368
    %v2558 = vunpack.c.l.b16 %v2369
    %v2559 = vunpack.c.h.b16 %v2369
    %v2560 = vunpack.c.l.b16 %v2370
    %v2561 = vunpack.c.h.b16 %v2370
    %v2562 = vunpack.c.l.b16 %v2371
    %v2563 = vunpack.c.h.b16 %v2371
    %v2564 = vunpack.c.l.b16 %v2372
    %v2565 = vunpack.c.h.b16 %v2372
    %v2566 = vunpack.c.l.b16 %v2373
    %v2567 = vunpack.c.h.b16 %v2373
    %v2568 = vunpack.c.l.b16 %v2374
    %v2569 = vunpack.c.h.b16 %v2374
    %v2570 = vunpack.c.l.b16 %v2375
    %v2571 = vunpack.c.h.b16 %v2375
    %v2572 = vunpack.c.l.b16 %v2376
    %v2573 = vunpack.c.h.b16 %v2376
    %v2574 = vunpack.c.l.b16 %v2377
    %v2575 = vunpack.c.h.b16 %v2377
    %v2576 = vunpack.c.l.b16 %v2378
    %v2577 = vunpack.c.h.b16 %v2378
    %v2578 = vunpack.c.l.b16 %v2379
    %v2579 = vunpack.c.h.b16 %v2379
    %v2580 = vunpack.c.l.b16 %v2380
    %v2581 = vunpack.c.h.b16 %v2380
    %v2582 = vunpack.c.l.b16 %v2381
    %v2583 = vunpack.c.h.b16 %v2381
    %v2584 = vunpack.c.l.b16 %v2382
    %v2585 = vunpack.c.h.b16 %v2382
    %v2586 = vunpack.c.l.b16 %v2383
    %v2587 = vunpack.c.h.b16 %v2383
    %v2588 = vpack.c.b16 %v2462, %v2460
    %v2589 = vpack.c.b16 %v2463, %v2461
    %v2590 = vpack.c.b16 %v2466, %v2464
    %v2591 = vpack.c.b16 %v2467, %v2465
    %v2592 = vpack.c.b16 %v2470, %v2468
    %v2593 = vpack.c.b16 %v2471, %v2469
    %v2594 = vpack.c.b16 %v2474, %v2472
    %v2595 = vpack.c.b16 %v2475, %v2473
    %v2596 = vpack.c.b16 %v2478, %v2476
    %v2597 = vpack.c.b16 %v2479, %v2477
    %v2598 = vpack.c.b16 %v2482, %v2480
    %v2599 = vpack.c.b16 %v2483, %v2481
    %v2600 = vpack.c.b16 %v2486, %v2484
    %v2601 = vpack.c.b16 %v2487, %v2485
    %v2602 = vpack.c.b16 %v2490, %v2488
    %v2603 = vpack.c.b16 %v2491, %v2489
    %v2604 = vpack.c.b16 %v2494, %v2492
    %v2605 = vpack.c.b16 %v2495, %v2493
    %v2606 = vpack.c.b16 %v2498, %v2496
    %v2607 = vpack.c.b16 %v2499, %v2497
    %v2608 = vpack.c.b16 %v2502, %v2500
    %v2609 = vpack.c.b16 %v2503, %v2501
    %v2610 = vpack.c.b16 %v2506, %v2504
    %v2611 = vpack.c.b16 %v2507, %v2505
    %v2612 = vpack.c.b16 %v2510, %v2508
    %v2613 = vpack.c.b16 %v2511, %v2509
    %v2614 = vpack.c.b16 %v2514, %v2512
    %v2615 = vpack.c.b16 %v2515, %v2513
    %v2616 = vpack.c.b16 %v2518, %v2516
    %v2617 = vpack.c.b16 %v2519, %v2517
    %v2618 = vpack.c.b16 %v2522, %v2520
    %v2619 = vpack.c.b16 %v2523, %v2521
    %v2620 = vpack.c.b16 %v2526, %v2524
    %v2621 = vpack.c.b16 %v2527, %v2525
    %v2622 = vpack.c.b16 %v2530, %v2528
    %v2623 = vpack.c.b16 %v2531, %v2529
    %v2624 = vpack.c.b16 %v2534, %v2532
    %v2625 = vpack.c.b16 %v2535, %v2533
    %v2626 = vpack.c.b16 %v2538, %v2536
    %v2627 = vpack.c.b16 %v2539, %v2537
    %v2628 = vpack.c.b16 %v2542, %v2540
    %v2629 = vpack.c.b16 %v2543, %v2541
    %v2630 = vpack.c.b16 %v2546, %v2544
    %v2631 = vpack.c.b16 %v2547, %v2545
    %v2632 = vpack.c.b16 %v2550, %v2548
    %v2633 = vpack.c.b16 %v2551, %v2549
    %v2634 = vpack.c.b16 %v2554, %v2552
    %v2635 = vpack.c.b16 %v2555, %v2553
    %v2636 = vpack.c.b16 %v2558, %v2556
    %v2637 = vpack.c.b16 %v2559, %v2557
    %v2638 = vpack.c.b16 %v2562, %v2560
    %v2639 = vpack.c.b16 %v2563, %v2561
    %v2640 = vpack.c.b16 %v2566, %v2564
    %v2641 = vpack.c.b16 %v2567, %v2565
    %v2642 = vpack.c.b16 %v2570, %v2568
    %v2643 = vpack.c.b16 %v2571, %v2569
    %v2644 = vpack.c.b16 %v2574, %v2572
    %v2645 = vpack.c.b16 %v2575, %v2573
    %v2646 = vpack.c.b16 %v2578, %v2576
    %v2647 = vpack.c.b16 %v2579, %v2577
    %v2648 = vpack.c.b16 %v2582, %v2580
    %v2649 = vpack.c.b16 %v2583, %v2581
    %v2650 = vpack.c.b16 %v2586, %v2584
    %v2651 = vpack.c.b16 %v2587, %v2585
    %2716 = vmatprep.subr.bf16.mxu0 %v2603
    %2717 = vmatpush1.bf16.msra.mxu0 %v2602
    %2718 = vmatprep.subr.bf16.mxu0 %v2601
    %2719 = vmatpush1.bf16.msra.mxu0 %v2600
    %2720 = vmatprep.subr.bf16.mxu0 %v2599
    %2721 = vmatpush1.bf16.msra.mxu0 %v2598
    %2722 = vmatprep.subr.bf16.mxu0 %v2597
    %2723 = vmatpush1.bf16.msra.mxu0 %v2596
    %2724 = vmatprep.subr.bf16.mxu0 %v2595
    %2725 = vmatpush1.bf16.msra.mxu0 %v2594
    %2726 = vmatprep.subr.bf16.mxu0 %v2593
    %2727 = vmatpush1.bf16.msra.mxu0 %v2592
    %2728 = vmatprep.subr.bf16.mxu0 %v2591
    %2729 = vmatpush1.bf16.msra.mxu0 %v2590
    %2730 = vmatprep.subr.bf16.mxu0 %v2589
    %2731 = vmatpush1.bf16.msra.mxu0 %v2588
    %2732 = vmatprep.subr.bf16.mxu0 %v2619
    %2733 = vmatpush2.bf16.msra.mxu0 %v2618
    %2734 = vmatprep.subr.bf16.mxu0 %v2617
    %2735 = vmatpush2.bf16.msra.mxu0 %v2616
    %2736 = vmatprep.subr.bf16.mxu0 %v2615
    %2737 = vmatpush2.bf16.msra.mxu0 %v2614
    %2738 = vmatprep.subr.bf16.mxu0 %v2613
    %2739 = vmatpush2.bf16.msra.mxu0 %v2612
    %2740 = vmatprep.subr.bf16.mxu0 %v2611
    %2741 = vmatpush2.bf16.msra.mxu0 %v2610
    %2742 = vmatprep.subr.bf16.mxu0 %v2609
    %2743 = vmatpush2.bf16.msra.mxu0 %v2608
    %2744 = vmatprep.subr.bf16.mxu0 %v2607
    %2745 = vmatpush2.bf16.msra.mxu0 %v2606
    %2746 = vmatprep.subr.bf16.mxu0 %v2605
    %2747 = vmatpush2.bf16.msra.mxu0 %v2604
    %2748 = vmatprep.mubr.bf16.mxu0 %v2317
    %2749 = vmatmul.mubr.bf16.gmra.mxu0 %v2316
    %v2750 = vpop.f32.mrf.mxu0
    %v2751 = vadd.f32 %v2389, %v2750
    %v2752 = vpop.f32.mrf.mxu0
    %v2753 = vadd.f32 %v2393, %v2752
    %v2754 = vpop.f32.mrf.mxu0
    %v2755 = vpop.f32.mrf.mxu0
    %2756 = vdwg.mxu0
    %2757 = vmatprep.subr.bf16.mxu0 %v2635
    %2758 = vmatpush1.bf16.msra.mxu0 %v2634
    %2759 = vmatprep.subr.bf16.mxu0 %v2633
    %2760 = vmatpush1.bf16.msra.mxu0 %v2632
    %2761 = vmatprep.subr.bf16.mxu0 %v2631
    %2762 = vmatpush1.bf16.msra.mxu0 %v2630
    %2763 = vmatprep.subr.bf16.mxu0 %v2629
    %2764 = vmatpush1.bf16.msra.mxu0 %v2628
    %2765 = vmatprep.subr.bf16.mxu0 %v2627
    %2766 = vmatpush1.bf16.msra.mxu0 %v2626
    %2767 = vmatprep.subr.bf16.mxu0 %v2625
    %2768 = vmatpush1.bf16.msra.mxu0 %v2624
    %2769 = vmatprep.subr.bf16.mxu0 %v2623
    %2770 = vmatpush1.bf16.msra.mxu0 %v2622
    %2771 = vmatprep.subr.bf16.mxu0 %v2621
    %2772 = vmatpush1.bf16.msra.mxu0 %v2620
    %2773 = vmatprep.subr.bf16.mxu0 %v2651
    %2774 = vmatpush2.bf16.msra.mxu0 %v2650
    %2775 = vmatprep.subr.bf16.mxu0 %v2649
    %2776 = vmatpush2.bf16.msra.mxu0 %v2648
    %2777 = vmatprep.subr.bf16.mxu0 %v2647
    %2778 = vmatpush2.bf16.msra.mxu0 %v2646
    %2779 = vmatprep.subr.bf16.mxu0 %v2645
    %2780 = vmatpush2.bf16.msra.mxu0 %v2644
    %2781 = vmatprep.subr.bf16.mxu0 %v2643
    %2782 = vmatpush2.bf16.msra.mxu0 %v2642
    %2783 = vmatprep.subr.bf16.mxu0 %v2641
    %2784 = vmatpush2.bf16.msra.mxu0 %v2640
    %2785 = vmatprep.subr.bf16.mxu0 %v2639
    %2786 = vmatpush2.bf16.msra.mxu0 %v2638
    %2787 = vmatprep.subr.bf16.mxu0 %v2637
    %2788 = vmatpush2.bf16.msra.mxu0 %v2636
    %2789 = vmatprep.mubr.bf16.mxu0 %v2319
    %2790 = vmatmul.mubr.bf16.gmra.mxu0 %v2318
    %v2791 = vpop.f32.mrf.mxu0
    %v2792 = vadd.f32 %v2751, %v2791
    %v2793 = vpop.f32.mrf.mxu0
    %v2794 = vadd.f32 %v2753, %v2793
    %v2795 = vpop.f32.mrf.mxu0
    %v2796 = vpop.f32.mrf.mxu0
    %2797 = vdwg.mxu0
    %v2798 = vmax.f32 %v2792, 0.0
    %v2799 = vmax.f32 %v2794, 0.0
    %v2800 = vpack.c.bf16 %v2798, %v2798
    %v2801 = vpack.c.bf16 %v2799, %v2799
    %v2802 = vld [vmem:[#allocation9] sm:$0xf]
    %v2803 = vld [vmem:[#allocation9 + $0x4] sm:$0xf]
    %v2804 = vld [vmem:[#allocation9 + $0x8] sm:$0xf]
    %v2805 = vld [vmem:[#allocation9 + $0xc] sm:$0xf]
    %v2806 = vld [vmem:[#allocation9 + $0x10] sm:$0xf]
    %v2807 = vld [vmem:[#allocation9 + $0x14] sm:$0xf]
    %v2808 = vld [vmem:[#allocation9 + $0x18] sm:$0xf]
    %v2809 = vld [vmem:[#allocation9 + $0x1c] sm:$0xf]
    %v2810 = vld [vmem:[#allocation9 + $0x20] sm:$0xf]
    %v2811 = vld [vmem:[#allocation9 + $0x24] sm:$0xf]
    %v2812 = vld [vmem:[#allocation9 + $0x28] sm:$0xf]
    %v2813 = vld [vmem:[#allocation9 + $0x2c] sm:$0xf]
    %v2814 = vld [vmem:[#allocation9 + $0x30] sm:$0xf]
    %v2815 = vld [vmem:[#allocation9 + $0x34] sm:$0xf]
    %v2816 = vld [vmem:[#allocation9 + $0x38] sm:$0xf]
    %v2817 = vld [vmem:[#allocation9 + $0x3c] sm:$0xf]
    %v2818 = vld [vmem:[#allocation9 + $0x40] sm:$0xf]
    %v2819 = vld [vmem:[#allocation9 + $0x44] sm:$0xf]
    %v2820 = vld [vmem:[#allocation9 + $0x48] sm:$0xf]
    %v2821 = vld [vmem:[#allocation9 + $0x4c] sm:$0xf]
    %v2822 = vld [vmem:[#allocation9 + $0x50] sm:$0xf]
    %v2823 = vld [vmem:[#allocation9 + $0x54] sm:$0xf]
    %v2824 = vld [vmem:[#allocation9 + $0x58] sm:$0xf]
    %v2825 = vld [vmem:[#allocation9 + $0x5c] sm:$0xf]
    %v2826 = vld [vmem:[#allocation9 + $0x60] sm:$0xf]
    %v2827 = vld [vmem:[#allocation9 + $0x64] sm:$0xf]
    %v2828 = vld [vmem:[#allocation9 + $0x68] sm:$0xf]
    %v2829 = vld [vmem:[#allocation9 + $0x6c] sm:$0xf]
    %v2830 = vld [vmem:[#allocation9 + $0x70] sm:$0xf]
    %v2831 = vld [vmem:[#allocation9 + $0x74] sm:$0xf]
    %v2832 = vld [vmem:[#allocation9 + $0x78] sm:$0xf]
    %v2833 = vld [vmem:[#allocation9 + $0x7c] sm:$0xf]
    %v2834 = vld [vmem:[%s8] sm:$0x1]
    %v2836 = vlaneseq
    %v2837 = vshrl.u32 %v2836, 7
    %v2838 = vsub.s32 0, %v2837
    %v2839 = vrot.slane %v2834, %v2838
    %v2873 = vunpack.c.l.b16 %v2802
    %v2874 = vunpack.c.l.b16 %v2803
    %v2875 = vunpack.c.l.b16 %v2804
    %v2876 = vunpack.c.l.b16 %v2805
    %v2877 = vunpack.c.l.b16 %v2806
    %v2878 = vunpack.c.l.b16 %v2807
    %v2879 = vunpack.c.l.b16 %v2808
    %v2880 = vunpack.c.l.b16 %v2809
    %v2881 = vunpack.c.l.b16 %v2810
    %v2882 = vunpack.c.l.b16 %v2811
    %v2883 = vunpack.c.l.b16 %v2812
    %v2884 = vunpack.c.l.b16 %v2813
    %v2885 = vunpack.c.l.b16 %v2814
    %v2886 = vunpack.c.l.b16 %v2815
    %v2887 = vunpack.c.l.b16 %v2816
    %v2888 = vunpack.c.l.b16 %v2817
    %v2889 = vunpack.c.l.b16 %v2818
    %v2890 = vunpack.c.l.b16 %v2819
    %v2891 = vunpack.c.l.b16 %v2820
    %v2892 = vunpack.c.l.b16 %v2821
    %v2893 = vunpack.c.l.b16 %v2822
    %v2894 = vunpack.c.l.b16 %v2823
    %v2895 = vunpack.c.l.b16 %v2824
    %v2896 = vunpack.c.l.b16 %v2825
    %v2897 = vunpack.c.l.b16 %v2826
    %v2898 = vunpack.c.l.b16 %v2827
    %v2899 = vunpack.c.l.b16 %v2828
    %v2900 = vunpack.c.l.b16 %v2829
    %v2901 = vunpack.c.l.b16 %v2830
    %v2902 = vunpack.c.l.b16 %v2831
    %v2903 = vunpack.c.l.b16 %v2832
    %v2904 = vunpack.c.l.b16 %v2833
    %v2905 = vpack.c.b16 %v2874, %v2873
    %v2906 = vpack.c.b16 %v2876, %v2875
    %v2907 = vpack.c.b16 %v2878, %v2877
    %v2908 = vpack.c.b16 %v2880, %v2879
    %v2909 = vpack.c.b16 %v2882, %v2881
    %v2910 = vpack.c.b16 %v2884, %v2883
    %v2911 = vpack.c.b16 %v2886, %v2885
    %v2912 = vpack.c.b16 %v2888, %v2887
    %v2913 = vpack.c.b16 %v2890, %v2889
    %v2914 = vpack.c.b16 %v2892, %v2891
    %v2915 = vpack.c.b16 %v2894, %v2893
    %v2916 = vpack.c.b16 %v2896, %v2895
    %v2917 = vpack.c.b16 %v2898, %v2897
    %v2918 = vpack.c.b16 %v2900, %v2899
    %v2919 = vpack.c.b16 %v2902, %v2901
    %v2920 = vpack.c.b16 %v2904, %v2903
    %2937 = vmatprep.subr.bf16.mxu0 0
    %2938 = vmatpush1.bf16.msra.mxu0 %v2912
    %2939 = vmatprep.subr.bf16.mxu0 0
    %2940 = vmatpush1.bf16.msra.mxu0 %v2911
    %2941 = vmatprep.subr.bf16.mxu0 0
    %2942 = vmatpush1.bf16.msra.mxu0 %v2910
    %2943 = vmatprep.subr.bf16.mxu0 0
    %2944 = vmatpush1.bf16.msra.mxu0 %v2909
    %2945 = vmatprep.subr.bf16.mxu0 0
    %2946 = vmatpush1.bf16.msra.mxu0 %v2908
    %2947 = vmatprep.subr.bf16.mxu0 0
    %2948 = vmatpush1.bf16.msra.mxu0 %v2907
    %2949 = vmatprep.subr.bf16.mxu0 0
    %2950 = vmatpush1.bf16.msra.mxu0 %v2906
    %2951 = vmatprep.subr.bf16.mxu0 0
    %2952 = vmatpush1.bf16.msra.mxu0 %v2905
    %2953 = vmatprep.subr.bf16.mxu0 0
    %2954 = vmatpush2.bf16.msra.mxu0 %v2920
    %2955 = vmatprep.subr.bf16.mxu0 0
    %2956 = vmatpush2.bf16.msra.mxu0 %v2919
    %2957 = vmatprep.subr.bf16.mxu0 0
    %2958 = vmatpush2.bf16.msra.mxu0 %v2918
    %2959 = vmatprep.subr.bf16.mxu0 0
    %2960 = vmatpush2.bf16.msra.mxu0 %v2917
    %2961 = vmatprep.subr.bf16.mxu0 0
    %2962 = vmatpush2.bf16.msra.mxu0 %v2916
    %2963 = vmatprep.subr.bf16.mxu0 0
    %2964 = vmatpush2.bf16.msra.mxu0 %v2915
    %2965 = vmatprep.subr.bf16.mxu0 0
    %2966 = vmatpush2.bf16.msra.mxu0 %v2914
    %2967 = vmatprep.subr.bf16.mxu0 0
    %2968 = vmatpush2.bf16.msra.mxu0 %v2913
    %2969 = vmatprep.mubr.bf16.mxu0 %v2801
    %2970 = vmatmul.mubr.bf16.gmra.mxu0 %v2800
    %v2971 = vpop.f32.mrf.mxu0
    %v2972 = vadd.f32 %v2839, %v2971
    %v2973 = vpop.f32.mrf.mxu0
    %v2974 = vpop.f32.mrf.mxu0
    %v2975 = vpop.f32.mrf.mxu0
    %2976 = vdwg.mxu0
    %v2977 = vmax.f32 %v2972, 0.0
    %v2978 = vpack.c.bf16 %v2977, %v2977
    %v2979 = vld [vmem:[%s9] sm:$0xf]
    %v2980 = vld [vmem:[%s9 + $0x4] sm:$0xf]
    %v2981 = vld [vmem:[%s9 + $0x8] sm:$0xf]
    %v2982 = vld [vmem:[%s9 + $0xc] sm:$0xf]
    %v2983 = vld [vmem:[%s9 + $0x10] sm:$0xf]
    %v2984 = vld [vmem:[%s9 + $0x14] sm:$0xf]
    %v2985 = vld [vmem:[%s9 + $0x18] sm:$0xf]
    %v2986 = vld [vmem:[%s9 + $0x1c] sm:$0xf]
    %v2987 = vld [vmem:[%s9 + $0x20] sm:$0xf]
    %v2988 = vld [vmem:[%s9 + $0x24] sm:$0xf]
    %v2989 = vld [vmem:[%s9 + $0x28] sm:$0xf]
    %v2990 = vld [vmem:[%s9 + $0x2c] sm:$0xf]
    %v2991 = vld [vmem:[%s9 + $0x30] sm:$0xf]
    %v2992 = vld [vmem:[%s9 + $0x34] sm:$0xf]
    %v2993 = vld [vmem:[%s9 + $0x38] sm:$0xf]
    %v2994 = vld [vmem:[%s9 + $0x3c] sm:$0xf]
    %v2995 = vld [vmem:[%s10] sm:$0x1]
    %v2997 = vlaneseq
    %v2998 = vshrl.u32 %v2997, 7
    %v2999 = vsub.s32 0, %v2998
    %v3000 = vrot.slane %v2995, %v2999
    %v3018 = vunpack.c.l.b16 %v2979
    %v3019 = vunpack.c.l.b16 %v2980
    %v3020 = vunpack.c.l.b16 %v2981
    %v3021 = vunpack.c.l.b16 %v2982
    %v3022 = vunpack.c.l.b16 %v2983
    %v3023 = vunpack.c.l.b16 %v2984
    %v3024 = vunpack.c.l.b16 %v2985
    %v3025 = vunpack.c.l.b16 %v2986
    %v3026 = vunpack.c.l.b16 %v2987
    %v3027 = vunpack.c.l.b16 %v2988
    %v3028 = vunpack.c.l.b16 %v2989
    %v3029 = vunpack.c.l.b16 %v2990
    %v3030 = vunpack.c.l.b16 %v2991
    %v3031 = vunpack.c.l.b16 %v2992
    %v3032 = vunpack.c.l.b16 %v2993
    %v3033 = vunpack.c.l.b16 %v2994
    %v3034 = vpack.c.b16 %v3019, %v3018
    %v3035 = vpack.c.b16 %v3021, %v3020
    %v3036 = vpack.c.b16 %v3023, %v3022
    %v3037 = vpack.c.b16 %v3025, %v3024
    %v3038 = vpack.c.b16 %v3027, %v3026
    %v3039 = vpack.c.b16 %v3029, %v3028
    %v3040 = vpack.c.b16 %v3031, %v3030
    %v3041 = vpack.c.b16 %v3033, %v3032
    %3050 = vmatprep.subr.bf16.mxu0 0
    %3051 = vmatpush1.bf16.msra.mxu0 %v3041
    %3052 = vmatprep.subr.bf16.mxu0 0
    %3053 = vmatpush1.bf16.msra.mxu0 %v3040
    %3054 = vmatprep.subr.bf16.mxu0 0
    %3055 = vmatpush1.bf16.msra.mxu0 %v3039
    %3056 = vmatprep.subr.bf16.mxu0 0
    %3057 = vmatpush1.bf16.msra.mxu0 %v3038
    %3058 = vmatprep.subr.bf16.mxu0 0
    %3059 = vmatpush1.bf16.msra.mxu0 %v3037
    %3060 = vmatprep.subr.bf16.mxu0 0
    %3061 = vmatpush1.bf16.msra.mxu0 %v3036
    %3062 = vmatprep.subr.bf16.mxu0 0
    %3063 = vmatpush1.bf16.msra.mxu0 %v3035
    %3064 = vmatprep.subr.bf16.mxu0 0
    %3065 = vmatpush1.bf16.msra.mxu0 %v3034
    %3066 = vmatprep.subr.bf16.mxu0 0
    %3067 = vmatpush2.bf16.msra.mxu0 0
    %3068 = vmatprep.subr.bf16.mxu0 0
    %3069 = vmatpush2.bf16.msra.mxu0 0
    %3070 = vmatprep.subr.bf16.mxu0 0
    %3071 = vmatpush2.bf16.msra.mxu0 0
    %3072 = vmatprep.subr.bf16.mxu0 0
    %3073 = vmatpush2.bf16.msra.mxu0 0
    %3074 = vmatprep.subr.bf16.mxu0 0
    %3075 = vmatpush2.bf16.msra.mxu0 0
    %3076 = vmatprep.subr.bf16.mxu0 0
    %3077 = vmatpush2.bf16.msra.mxu0 0
    %3078 = vmatprep.subr.bf16.mxu0 0
    %3079 = vmatpush2.bf16.msra.mxu0 0
    %3080 = vmatprep.subr.bf16.mxu0 0
    %3081 = vmatpush2.bf16.msra.mxu0 0
    %3082 = vmatprep.mubr.bf16.mxu0 0
    %3083 = vmatmul.mubr.bf16.gmra.mxu0 %v2978
    %v3084 = vpop.f32.mrf.mxu0
    %v3085 = vadd.f32 %v3000, %v3084
    %v3086 = vpop.f32.mrf.mxu0
    %v3087 = vpop.f32.mrf.mxu0
    %v3088 = vpop.f32.mrf.mxu0
    %3089 = vdwg.mxu0
    %v3090 = vmax.f32 %v3085, 0.0
    %v3091 = vpack.c.bf16 %v3090, %v3090
    %v3092 = vld [vmem:[%s11] sm:$0x1]
    %v3093 = vld [vmem:[#allocation2] sm:$0x1]
    %3095 = vset.pattern.permute.xlu0 0
    %3096 = vperm.xlu0 %3095, %v3093
    %v3097 = vpop.permute.xlu0 %3096
    %v3099 = vlaneseq
    %v3100 = vshrl.u32 %v3099, 7
    %v3101 = vsub.s32 0, %v3100
    %v3102 = vrot.slane %v3097, %v3101
    %vm3103 = vcmask 523264
    %v3105 = vsel %vm3103, %v3092, 0
    %v3108 = vsel %vm3103, %v3091, 0
    %3110 = vmatprep.subr.bf16.mxu0 0
    %3111 = vmatpush1.bf16.xpose.msra.mxu0 0
    %3112 = vmatprep.subr.bf16.mxu0 0
    %3113 = vmatpush1.bf16.xpose.msra.mxu0 0
    %3114 = vmatprep.subr.bf16.mxu0 0
    %3115 = vmatpush1.bf16.xpose.msra.mxu0 0
    %3116 = vmatprep.subr.bf16.mxu0 0
    %3117 = vmatpush1.bf16.xpose.msra.mxu0 0
    %3118 = vmatprep.subr.bf16.mxu0 0
    %3119 = vmatpush1.bf16.xpose.msra.mxu0 0
    %3120 = vmatprep.subr.bf16.mxu0 0
    %3121 = vmatpush1.bf16.xpose.msra.mxu0 0
    %3122 = vmatprep.subr.bf16.mxu0 0
    %3123 = vmatpush1.bf16.xpose.msra.mxu0 0
    %3124 = vmatprep.subr.bf16.mxu0 0
    %3125 = vmatpush1.bf16.xpose.msra.mxu0 %v3108
    %3126 = vmatprep.subr.bf16.mxu0 0
    %3127 = vmatpush2.bf16.xpose.msra.mxu0 0
    %3128 = vmatprep.subr.bf16.mxu0 0
    %3129 = vmatpush2.bf16.xpose.msra.mxu0 0
    %3130 = vmatprep.subr.bf16.mxu0 0
    %3131 = vmatpush2.bf16.xpose.msra.mxu0 0
    %3132 = vmatprep.subr.bf16.mxu0 0
    %3133 = vmatpush2.bf16.xpose.msra.mxu0 0
    %3134 = vmatprep.subr.bf16.mxu0 0
    %3135 = vmatpush2.bf16.xpose.msra.mxu0 0
    %3136 = vmatprep.subr.bf16.mxu0 0
    %3137 = vmatpush2.bf16.xpose.msra.mxu0 0
    %3138 = vmatprep.subr.bf16.mxu0 0
    %3139 = vmatpush2.bf16.xpose.msra.mxu0 0
    %3140 = vmatprep.subr.bf16.mxu0 0
    %3141 = vmatpush2.bf16.xpose.msra.mxu0 0
    %3142 = vmatprep.mubr.bf16.mxu0 0
    %3143 = vmatmul.mubr.bf16.gmra.mxu0 %v3105
    %v3144 = vpop.f32.mrf.mxu0
    %v3145 = vadd.f32 %v3102, %v3144
    %v3146 = vpop.f32.mrf.mxu0
    %v3147 = vpop.f32.mrf.mxu0
    %v3148 = vpop.f32.mrf.mxu0
    %3149 = vdwg.mxu0
    %vm3150 = vcmask 57344
    %3151 = vst.msk [vmem:[#allocation11] sm:$0x1] %vm3150, %v3145
    // Predicated region
    $region70: #{tpu_custom_call.1} parent=1 // pred_check
      _
    $region71: #{tpu_custom_call.1} parent=1 // pred_check_branch
      %3153 = sbr.rel (0) target = $region73
    $region72: #{tpu_custom_call.1} parent=1 // pred_region
      %s3155 = ssub.s32 16, 16
      %3156 = vsyncadd [#allocation5], %s3155
      %s3158 = sshll.u32 [#allocation11], 4
      %s3159 = int_to_ptr.vmem [resolvable:$true] %s3158
      %3161 = dma.vmem_to_hbm [thread:$0]  %s3159, 16, %s13, [#allocation5]
    $region73: #{tpu_custom_call.1} parent=1 // pred_fallthru
      _
    // Predicated region
    $region74: #{tpu_custom_call.1} parent=1 // pred_check
      _
    $region75: #{tpu_custom_call.1} parent=1 // pred_check_branch
      %3163 = sbr.rel (0) target = $region77
    $region76: #{tpu_custom_call.1} parent=1 // pred_region
      %3164 = dma.done [#allocation5], 16
    $region77: #{tpu_custom_call.1} parent=1 // pred_fallthru
      _
    %3165 = vsyncpa [#allocation4], 1
    %3166 = vsyncpa [#allocation7], 1
    %3167 = vsyncpa [#allocation10], 1
    %3168 = vsyncpa [#allocation5], 1

</llo_original>
